<compile_context>
chip_gen: v7x
topology: tpu7x:2x2x1
jax: 0.10.0
libtpu: 0.0.40
codegen_flags: <defaults>
</compile_context>

<pallas_src>
import jax
import jax.numpy as jnp
from jax.experimental import pallas as pl
from jax.experimental.pallas import tpu as pltpu

_LN_EPS = 1e-5
_INV_SQRT2 = 0.7071067811865476


def _make_encoder_kernel(num_layers, channels, in_dtype):
    """Fused [Linear -> LN(C) -> GELU] * (L-1) -> Linear over one point tile.

    Works in channels-first layout: h has shape (C, n_tile) throughout.
    """

    def kernel(x_ref, *refs):
        o_ref = refs[-1]
        params = refs[:-1]

        h = x_ref[...]                       # (2, n_tile), native dtype
        n_tile = h.shape[-1]
        idx = 0
        for l in range(num_layers):
            is_last = l == num_layers - 1
            w = params[idx][...]             # (C_out, C_in) -- native Conv1d weight
            b = params[idx + 1][...]         # (C_out, 1)
            idx += 2
            cin = channels[l]
            cout = channels[l + 1]

            if cin <= 4:
                # Contraction dim is tiny (the 2 x/y coordinates): skip the MXU
                # and build the per-point linear as broadcast outer-products on
                # the VPU (2 mul + 2 add over a few vregs).
                acc = jnp.broadcast_to(b.astype(jnp.float32), (cout, n_tile))
                for k in range(cin):
                    acc = acc + (w[:, k:k + 1].astype(jnp.float32)
                                 * h[k:k + 1, :].astype(jnp.float32))
                h = acc
            else:
                # Conv1d(kernel_size=1) == per-point linear. MXU matmul, f32 acc.
                h = jnp.dot(w, h, preferred_element_type=jnp.float32)
                h = h + b.astype(jnp.float32)

            if not is_last:
                g = params[idx][...]         # (C, 1) LayerNorm weight
                be = params[idx + 1][...]    # (C, 1) LayerNorm bias
                idx += 2

                # TransLN: LayerNorm over the channel (sublane) axis.
                mean = jnp.mean(h, axis=0, keepdims=True)
                var = jnp.mean(jnp.square(h - mean), axis=0, keepdims=True)
                h = (h - mean) * jax.lax.rsqrt(var + jnp.float32(_LN_EPS))
                h = h * g.astype(jnp.float32) + be.astype(jnp.float32)

                # Exact (erf-based) GELU -- matches torch.nn.GELU() default.
                h = 0.5 * h * (1.0 + jax.lax.erf(h * jnp.float32(_INV_SQRT2)))

                # Feed the next matmul in the input dtype (no-op for f32,
                # keeps the MXU at full rate for bf16 inputs).
                h = h.astype(in_dtype)

        o_ref[...] = h.astype(o_ref.dtype)

    return kernel


def keypoint_encoder_pallas(kpts, weights, biases, gammas, betas, *, n_tile=512):
    """Forward pass of KeypointEncoder_wo_score.

    kpts:    (B, 2, N)                         (Conv1d layout: channels first)
    weights: list of (C_out, C_in) Conv1d(k=1) weights (kernel dim squeezed)
    biases:  list of (C_out,) Conv1d biases
    gammas/betas: LayerNorm weight/bias, one per NON-final layer, shape (C_l,)
    returns: (B, feature_dim, N)
    """
    B, c_in, N = kpts.shape
    num_layers = len(weights)
    feature_dim = weights[-1].shape[0]
    channels = [c_in] + [int(w.shape[0]) for w in weights]

    # Don't tile wider than (128-rounded) N; keep n_tile a multiple of 128.
    n_tile = max(128, min(n_tile, ((N + 127) // 128) * 128))
    n_pad = ((N + n_tile - 1) // n_tile) * n_tile
    x = kpts
    if n_pad != N:
        x = jnp.pad(kpts, ((0, 0), (0, 0), (0, n_pad - N)))

    def const_spec(arr):
        r, c = arr.shape
        return pl.BlockSpec((r, c), lambda b, j: (0, 0))

    operands = [x]
    in_specs = [pl.BlockSpec((None, c_in, n_tile), lambda b, j: (b, 0, j))]
    flops = 0
    transcendentals = 0
    bytes_accessed = x.size * x.dtype.itemsize

    for l in range(num_layers):
        w = weights[l]
        cout, cin = w.shape
        b_ = biases[l].reshape(cout, 1)
        operands += [w, b_]
        in_specs += [const_spec(w), const_spec(b_)]
        bytes_accessed += w.size * w.dtype.itemsize + b_.size * b_.dtype.itemsize
        flops += 2 * B * n_pad * cin * cout
        if l < num_layers - 1:
            g = gammas[l].reshape(cout, 1)
            be = betas[l].reshape(cout, 1)
            operands += [g, be]
            in_specs += [const_spec(g), const_spec(be)]
            bytes_accessed += (g.size + be.size) * g.dtype.itemsize
            transcendentals += B * n_pad * cout      # one erf per hidden unit

    bytes_accessed += B * n_pad * feature_dim * kpts.dtype.itemsize

    out = pl.pallas_call(
        _make_encoder_kernel(num_layers, channels, x.dtype),
        out_shape=jax.ShapeDtypeStruct((B, feature_dim, n_pad), kpts.dtype),
        grid_spec=pltpu.PrefetchScalarGridSpec(
            num_scalar_prefetch=0,
            grid=(B, n_pad // n_tile),
            in_specs=in_specs,
            out_specs=pl.BlockSpec((None, feature_dim, n_tile),
                                   lambda b, j: (b, 0, j)),
        ),
        compiler_params=pltpu.CompilerParams(
            dimension_semantics=("parallel", "parallel")),  # shards across TCs
        cost_estimate=pl.CostEstimate(
            flops=flops,
            transcendentals=transcendentals,
            bytes_accessed=bytes_accessed),
    )(*operands)

    if n_pad != N:
        out = out[:, :, :N]                  # drop point padding
    return out                               # already (B, F, N)


def keypoint_encoder_reference(kpts, weights, biases, gammas, betas):
    """Pure-JAX reference matching the PyTorch forward exactly."""
    x = jnp.transpose(kpts, (0, 2, 1))              # (B, N, C)
    num_layers = len(weights)
    for l in range(num_layers):
        x = x @ weights[l].T + biases[l]
        if l < num_layers - 1:
            mean = jnp.mean(x, axis=-1, keepdims=True)
            var = jnp.mean(jnp.square(x - mean), axis=-1, keepdims=True)
            x = (x - mean) / jnp.sqrt(var + _LN_EPS)
            x = x * gammas[l] + betas[l]
            x = jax.nn.gelu(x, approximate=False)
    return jnp.transpose(x, (0, 2, 1))              # (B, F, N)


if __name__ == "__main__":
    # Small shapes consistent with the module:
    #   KeypointEncoder_wo_score(feature_dim=128, layers=[32, 64])
    #   -> MLP channels [2, 32, 64, 128]; input kpts (batch, 2, num_kpts).
    batch, num_kpts = 2, 500          # exercises the padded tail (500 -> 512)
    channels = [2, 32, 64, 128]
    num_layers = len(channels) - 1

    key = jax.random.PRNGKey(0)
    keys = jax.random.split(key, 1 + 4 * num_layers)

    kpts = jax.random.normal(keys[0], (batch, 2, num_kpts), dtype=jnp.float32)

    weights, biases, gammas, betas = [], [], [], []
    k = 1
    for l in range(num_layers):
        cin, cout = channels[l], channels[l + 1]
        bound = 1.0 / (cin ** 0.5)    # nn.Conv1d default init (kernel_size=1)
        weights.append(jax.random.uniform(
            keys[k], (cout, cin), jnp.float32, -bound, bound)); k += 1
        if l < num_layers - 1:
            biases.append(jax.random.uniform(
                keys[k], (cout,), jnp.float32, -bound, bound)); k += 1
            # LayerNorm affine params (perturbed so the test exercises them).
            gammas.append(1.0 + 0.05 * jax.random.normal(
                keys[k], (cout,), jnp.float32)); k += 1
            betas.append(0.05 * jax.random.normal(
                keys[k], (cout,), jnp.float32)); k += 1
        else:
            biases.append(jnp.zeros((cout,), jnp.float32))  # init.constant_(b, 0)

    out = jax.block_until_ready(
        keypoint_encoder_pallas(kpts, weights, biases, gammas, betas,
                                n_tile=512))
    ref = keypoint_encoder_reference(kpts, weights, biases, gammas, betas)

    assert out.shape == (batch, channels[-1], num_kpts), out.shape
    max_err = jnp.max(jnp.abs(out - ref))
    assert jnp.allclose(out, ref, atol=1e-4, rtol=1e-4), f"max abs err {max_err}"
    print("KERNEL_OK")
</pallas_src>

<mosaic_0001>
module attributes {stable_mosaic.version = 11 : i64} {
  func.func @kernel(%arg0: i32, %arg1: i32, %arg2: memref<1x2x512xf32, #tpu.memory_space<vmem>>, %arg3: memref<32x2xf32, #tpu.memory_space<vmem>>, %arg4: memref<32x1xf32, #tpu.memory_space<vmem>>, %arg5: memref<32x1xf32, #tpu.memory_space<vmem>>, %arg6: memref<32x1xf32, #tpu.memory_space<vmem>>, %arg7: memref<64x32xf32, #tpu.memory_space<vmem>>, %arg8: memref<64x1xf32, #tpu.memory_space<vmem>>, %arg9: memref<64x1xf32, #tpu.memory_space<vmem>>, %arg10: memref<64x1xf32, #tpu.memory_space<vmem>>, %arg11: memref<128x64xf32, #tpu.memory_space<vmem>>, %arg12: memref<128x1xf32, #tpu.memory_space<vmem>>, %arg13: memref<1x128x512xf32, #tpu.memory_space<vmem>>) attributes {dimension_semantics = [#tpu.dimension_semantics<parallel>, #tpu.dimension_semantics<parallel>], iteration_bounds = array<i64: 2, 1>, scalar_prefetch = 0 : i64, scratch_operands = 0 : i64, tpu.core_type = #tpu.core_type<tc>, window_params = [{transform_indices = @transform_0, window_bounds = array<i64: 1, 2, 512>}, {pipeline_mode = #tpu.pipeline_mode<synchronous>, transform_indices = @transform_1, window_bounds = array<i64: 32, 2>}, {pipeline_mode = #tpu.pipeline_mode<synchronous>, transform_indices = @transform_2, window_bounds = array<i64: 32, 1>}, {pipeline_mode = #tpu.pipeline_mode<synchronous>, transform_indices = @transform_3, window_bounds = array<i64: 32, 1>}, {pipeline_mode = #tpu.pipeline_mode<synchronous>, transform_indices = @transform_4, window_bounds = array<i64: 32, 1>}, {pipeline_mode = #tpu.pipeline_mode<synchronous>, transform_indices = @transform_5, window_bounds = array<i64: 64, 32>}, {pipeline_mode = #tpu.pipeline_mode<synchronous>, transform_indices = @transform_6, window_bounds = array<i64: 64, 1>}, {pipeline_mode = #tpu.pipeline_mode<synchronous>, transform_indices = @transform_7, window_bounds = array<i64: 64, 1>}, {pipeline_mode = #tpu.pipeline_mode<synchronous>, transform_indices = @transform_8, window_bounds = array<i64: 64, 1>}, {pipeline_mode = #tpu.pipeline_mode<synchronous>, transform_indices = @transform_9, window_bounds = array<i64: 128, 64>}, {pipeline_mode = #tpu.pipeline_mode<synchronous>, transform_indices = @transform_10, window_bounds = array<i64: 128, 1>}, {transform_indices = @transform_11, window_bounds = array<i64: 1, 128, 512>}]} {
    %c0 = arith.constant 0 : index
    %c0_0 = arith.constant 0 : index
    %c0_1 = arith.constant 0 : index
    %0 = vector.load %arg2[%c0, %c0_0, %c0_1] : memref<1x2x512xf32, #tpu.memory_space<vmem>>, vector<1x2x512xf32>
    %1 = vector.shape_cast %0 : vector<1x2x512xf32> to vector<2x512xf32>
    %c0_2 = arith.constant 0 : index
    %c0_3 = arith.constant 0 : index
    %2 = vector.load %arg3[%c0_2, %c0_3] : memref<32x2xf32, #tpu.memory_space<vmem>>, vector<32x2xf32>
    %c0_4 = arith.constant 0 : index
    %c0_5 = arith.constant 0 : index
    %3 = vector.load %arg4[%c0_4, %c0_5] : memref<32x1xf32, #tpu.memory_space<vmem>>, vector<32x1xf32>
    %4 = vector.shape_cast %3 : vector<32x1xf32> to vector<32x1xf32>
    %5 = vector.broadcast %4 : vector<32x1xf32> to vector<32x512xf32>
    %6 = vector.extract_strided_slice %2 {offsets = [0, 0], sizes = [32, 1], strides = [1, 1]} : vector<32x2xf32> to vector<32x1xf32>
    %7 = vector.extract_strided_slice %1 {offsets = [0, 0], sizes = [1, 512], strides = [1, 1]} : vector<2x512xf32> to vector<1x512xf32>
    %8 = vector.broadcast %6 : vector<32x1xf32> to vector<32x512xf32>
    %9 = vector.broadcast %7 : vector<1x512xf32> to vector<32x512xf32>
    %10 = arith.mulf %8, %9 : vector<32x512xf32>
    %11 = arith.addf %5, %10 : vector<32x512xf32>
    %12 = vector.extract_strided_slice %2 {offsets = [0, 1], sizes = [32, 1], strides = [1, 1]} : vector<32x2xf32> to vector<32x1xf32>
    %13 = vector.extract_strided_slice %1 {offsets = [1, 0], sizes = [1, 512], strides = [1, 1]} : vector<2x512xf32> to vector<1x512xf32>
    %14 = vector.broadcast %12 : vector<32x1xf32> to vector<32x512xf32>
    %15 = vector.broadcast %13 : vector<1x512xf32> to vector<32x512xf32>
    %16 = arith.mulf %14, %15 : vector<32x512xf32>
    %17 = arith.addf %11, %16 : vector<32x512xf32>
    %c0_6 = arith.constant 0 : index
    %c0_7 = arith.constant 0 : index
    %18 = vector.load %arg5[%c0_6, %c0_7] : memref<32x1xf32, #tpu.memory_space<vmem>>, vector<32x1xf32>
    %c0_8 = arith.constant 0 : index
    %c0_9 = arith.constant 0 : index
    %19 = vector.load %arg6[%c0_8, %c0_9] : memref<32x1xf32, #tpu.memory_space<vmem>>, vector<32x1xf32>
    %cst = arith.constant dense<0.000000e+00> : vector<512xf32>
    %20 = vector.multi_reduction <add>, %17, %cst [0] : vector<32x512xf32> to vector<512xf32>
    %21 = vector.shape_cast %20 : vector<512xf32> to vector<1x512xf32>
    %cst_10 = arith.constant 3.200000e+01 : f32
    %22 = vector.broadcast %cst_10 : f32 to vector<1x512xf32>
    %23 = arith.divf %21, %22 : vector<1x512xf32>
    %24 = vector.broadcast %23 : vector<1x512xf32> to vector<32x512xf32>
    %25 = arith.subf %17, %24 : vector<32x512xf32>
    %26 = arith.mulf %25, %25 : vector<32x512xf32>
    %cst_11 = arith.constant dense<0.000000e+00> : vector<512xf32>
    %27 = vector.multi_reduction <add>, %26, %cst_11 [0] : vector<32x512xf32> to vector<512xf32>
    %28 = vector.shape_cast %27 : vector<512xf32> to vector<1x512xf32>
    %cst_12 = arith.constant 3.200000e+01 : f32
    %29 = vector.broadcast %cst_12 : f32 to vector<1x512xf32>
    %30 = arith.divf %28, %29 : vector<1x512xf32>
    %31 = vector.broadcast %23 : vector<1x512xf32> to vector<32x512xf32>
    %32 = arith.subf %17, %31 : vector<32x512xf32>
    %cst_13 = arith.constant 9.99999974E-6 : f32
    %33 = vector.broadcast %cst_13 : f32 to vector<1x512xf32>
    %34 = arith.addf %30, %33 : vector<1x512xf32>
    %35 = math.rsqrt %34 : vector<1x512xf32>
    %36 = vector.broadcast %35 : vector<1x512xf32> to vector<32x512xf32>
    %37 = arith.mulf %32, %36 : vector<32x512xf32>
    %38 = vector.broadcast %18 : vector<32x1xf32> to vector<32x512xf32>
    %39 = arith.mulf %37, %38 : vector<32x512xf32>
    %40 = vector.broadcast %19 : vector<32x1xf32> to vector<32x512xf32>
    %41 = arith.addf %39, %40 : vector<32x512xf32>
    %cst_14 = arith.constant 5.000000e-01 : f32
    %42 = vector.broadcast %cst_14 : f32 to vector<32x512xf32>
    %43 = arith.mulf %42, %41 : vector<32x512xf32>
    %cst_15 = arith.constant 0.707106769 : f32
    %44 = vector.broadcast %cst_15 : f32 to vector<32x512xf32>
    %45 = arith.mulf %41, %44 : vector<32x512xf32>
    %46 = math.erf %45 : vector<32x512xf32>
    %cst_16 = arith.constant 1.000000e+00 : f32
    %47 = vector.broadcast %cst_16 : f32 to vector<32x512xf32>
    %48 = arith.addf %47, %46 : vector<32x512xf32>
    %49 = arith.mulf %43, %48 : vector<32x512xf32>
    %c0_17 = arith.constant 0 : index
    %c0_18 = arith.constant 0 : index
    %50 = vector.load %arg7[%c0_17, %c0_18] : memref<64x32xf32, #tpu.memory_space<vmem>>, vector<64x32xf32>
    %c0_19 = arith.constant 0 : index
    %c0_20 = arith.constant 0 : index
    %51 = vector.load %arg8[%c0_19, %c0_20] : memref<64x1xf32, #tpu.memory_space<vmem>>, vector<64x1xf32>
    %cst_21 = arith.constant dense<0.000000e+00> : vector<64x512xf32>
    %52 = tpu.matmul %50, %49, %cst_21 {dimension_numbers = #tpu.dot_dimension_numbers<[1], [0], [0], [1], [0, 0, 1, 1], [], []>} : vector<64x32xf32>, vector<32x512xf32>, vector<64x512xf32> -> vector<64x512xf32>
    %53 = vector.broadcast %51 : vector<64x1xf32> to vector<64x512xf32>
    %54 = arith.addf %52, %53 : vector<64x512xf32>
    %c0_22 = arith.constant 0 : index
    %c0_23 = arith.constant 0 : index
    %55 = vector.load %arg9[%c0_22, %c0_23] : memref<64x1xf32, #tpu.memory_space<vmem>>, vector<64x1xf32>
    %c0_24 = arith.constant 0 : index
    %c0_25 = arith.constant 0 : index
    %56 = vector.load %arg10[%c0_24, %c0_25] : memref<64x1xf32, #tpu.memory_space<vmem>>, vector<64x1xf32>
    %cst_26 = arith.constant dense<0.000000e+00> : vector<512xf32>
    %57 = vector.multi_reduction <add>, %54, %cst_26 [0] : vector<64x512xf32> to vector<512xf32>
    %58 = vector.shape_cast %57 : vector<512xf32> to vector<1x512xf32>
    %cst_27 = arith.constant 6.400000e+01 : f32
    %59 = vector.broadcast %cst_27 : f32 to vector<1x512xf32>
    %60 = arith.divf %58, %59 : vector<1x512xf32>
    %61 = vector.broadcast %60 : vector<1x512xf32> to vector<64x512xf32>
    %62 = arith.subf %54, %61 : vector<64x512xf32>
    %63 = arith.mulf %62, %62 : vector<64x512xf32>
    %cst_28 = arith.constant dense<0.000000e+00> : vector<512xf32>
    %64 = vector.multi_reduction <add>, %63, %cst_28 [0] : vector<64x512xf32> to vector<512xf32>
    %65 = vector.shape_cast %64 : vector<512xf32> to vector<1x512xf32>
    %cst_29 = arith.constant 6.400000e+01 : f32
    %66 = vector.broadcast %cst_29 : f32 to vector<1x512xf32>
    %67 = arith.divf %65, %66 : vector<1x512xf32>
    %68 = vector.broadcast %60 : vector<1x512xf32> to vector<64x512xf32>
    %69 = arith.subf %54, %68 : vector<64x512xf32>
    %cst_30 = arith.constant 9.99999974E-6 : f32
    %70 = vector.broadcast %cst_30 : f32 to vector<1x512xf32>
    %71 = arith.addf %67, %70 : vector<1x512xf32>
    %72 = math.rsqrt %71 : vector<1x512xf32>
    %73 = vector.broadcast %72 : vector<1x512xf32> to vector<64x512xf32>
    %74 = arith.mulf %69, %73 : vector<64x512xf32>
    %75 = vector.broadcast %55 : vector<64x1xf32> to vector<64x512xf32>
    %76 = arith.mulf %74, %75 : vector<64x512xf32>
    %77 = vector.broadcast %56 : vector<64x1xf32> to vector<64x512xf32>
    %78 = arith.addf %76, %77 : vector<64x512xf32>
    %cst_31 = arith.constant 5.000000e-01 : f32
    %79 = vector.broadcast %cst_31 : f32 to vector<64x512xf32>
    %80 = arith.mulf %79, %78 : vector<64x512xf32>
    %cst_32 = arith.constant 0.707106769 : f32
    %81 = vector.broadcast %cst_32 : f32 to vector<64x512xf32>
    %82 = arith.mulf %78, %81 : vector<64x512xf32>
    %83 = math.erf %82 : vector<64x512xf32>
    %cst_33 = arith.constant 1.000000e+00 : f32
    %84 = vector.broadcast %cst_33 : f32 to vector<64x512xf32>
    %85 = arith.addf %84, %83 : vector<64x512xf32>
    %86 = arith.mulf %80, %85 : vector<64x512xf32>
    %c0_34 = arith.constant 0 : index
    %c0_35 = arith.constant 0 : index
    %87 = vector.load %arg11[%c0_34, %c0_35] : memref<128x64xf32, #tpu.memory_space<vmem>>, vector<128x64xf32>
    %c0_36 = arith.constant 0 : index
    %c0_37 = arith.constant 0 : index
    %88 = vector.load %arg12[%c0_36, %c0_37] : memref<128x1xf32, #tpu.memory_space<vmem>>, vector<128x1xf32>
    %cst_38 = arith.constant dense<0.000000e+00> : vector<128x512xf32>
    %89 = tpu.matmul %87, %86, %cst_38 {dimension_numbers = #tpu.dot_dimension_numbers<[1], [0], [0], [1], [0, 0, 1, 1], [], []>} : vector<128x64xf32>, vector<64x512xf32>, vector<128x512xf32> -> vector<128x512xf32>
    %90 = vector.broadcast %88 : vector<128x1xf32> to vector<128x512xf32>
    %91 = arith.addf %89, %90 : vector<128x512xf32>
    %c0_39 = arith.constant 0 : index
    %c0_40 = arith.constant 0 : index
    %c0_41 = arith.constant 0 : index
    %92 = vector.load %arg13[%c0_39, %c0_40, %c0_41] : memref<1x128x512xf32, #tpu.memory_space<vmem>>, vector<1x128x512xf32>
    %93 = vector.shape_cast %92 : vector<1x128x512xf32> to vector<128x512xf32>
    %94 = vector.shape_cast %91 : vector<128x512xf32> to vector<1x128x512xf32>
    tpu.vector_store %arg13[%c0_39, %c0_40, %c0_41], %94 {strides = array<i32>} : memref<1x128x512xf32, #tpu.memory_space<vmem>>, vector<1x128x512xf32>,
    return
  }
  func.func @transform_0(%arg0: i32, %arg1: i32) -> (i32, i32, i32) {
    %c0_i32 = arith.constant 0 : i32
    %c0_i32_0 = arith.constant 0 : i32
    return %arg0, %c0_i32, %arg1 : i32, i32, i32
  }
  func.func @transform_1(%arg0: i32, %arg1: i32) -> (i32, i32) {
    %c0_i32 = arith.constant 0 : i32
    %c0_i32_0 = arith.constant 0 : i32
    %c0_i32_1 = arith.constant 0 : i32
    return %c0_i32, %c0_i32_0 : i32, i32
  }
  func.func @transform_2(%arg0: i32, %arg1: i32) -> (i32, i32) {
    %c0_i32 = arith.constant 0 : i32
    %c0_i32_0 = arith.constant 0 : i32
    %c0_i32_1 = arith.constant 0 : i32
    return %c0_i32, %c0_i32_0 : i32, i32
  }
  func.func @transform_3(%arg0: i32, %arg1: i32) -> (i32, i32) {
    %c0_i32 = arith.constant 0 : i32
    %c0_i32_0 = arith.constant 0 : i32
    %c0_i32_1 = arith.constant 0 : i32
    return %c0_i32, %c0_i32_0 : i32, i32
  }
  func.func @transform_4(%arg0: i32, %arg1: i32) -> (i32, i32) {
    %c0_i32 = arith.constant 0 : i32
    %c0_i32_0 = arith.constant 0 : i32
    %c0_i32_1 = arith.constant 0 : i32
    return %c0_i32, %c0_i32_0 : i32, i32
  }
  func.func @transform_5(%arg0: i32, %arg1: i32) -> (i32, i32) {
    %c0_i32 = arith.constant 0 : i32
    %c0_i32_0 = arith.constant 0 : i32
    %c0_i32_1 = arith.constant 0 : i32
    return %c0_i32, %c0_i32_0 : i32, i32
  }
  func.func @transform_6(%arg0: i32, %arg1: i32) -> (i32, i32) {
    %c0_i32 = arith.constant 0 : i32
    %c0_i32_0 = arith.constant 0 : i32
    %c0_i32_1 = arith.constant 0 : i32
    return %c0_i32, %c0_i32_0 : i32, i32
  }
  func.func @transform_7(%arg0: i32, %arg1: i32) -> (i32, i32) {
    %c0_i32 = arith.constant 0 : i32
    %c0_i32_0 = arith.constant 0 : i32
    %c0_i32_1 = arith.constant 0 : i32
    return %c0_i32, %c0_i32_0 : i32, i32
  }
  func.func @transform_8(%arg0: i32, %arg1: i32) -> (i32, i32) {
    %c0_i32 = arith.constant 0 : i32
    %c0_i32_0 = arith.constant 0 : i32
    %c0_i32_1 = arith.constant 0 : i32
    return %c0_i32, %c0_i32_0 : i32, i32
  }
  func.func @transform_9(%arg0: i32, %arg1: i32) -> (i32, i32) {
    %c0_i32 = arith.constant 0 : i32
    %c0_i32_0 = arith.constant 0 : i32
    %c0_i32_1 = arith.constant 0 : i32
    return %c0_i32, %c0_i32_0 : i32, i32
  }
  func.func @transform_10(%arg0: i32, %arg1: i32) -> (i32, i32) {
    %c0_i32 = arith.constant 0 : i32
    %c0_i32_0 = arith.constant 0 : i32
    %c0_i32_1 = arith.constant 0 : i32
    return %c0_i32, %c0_i32_0 : i32, i32
  }
  func.func @transform_11(%arg0: i32, %arg1: i32) -> (i32, i32, i32) {
    %c0_i32 = arith.constant 0 : i32
    %c0_i32_0 = arith.constant 0 : i32
    return %arg0, %c0_i32, %arg1 : i32, i32, i32
  }
}

</mosaic_0001>

<llo_original>
// kernel: tpu_custom_call.1
$region0: #{tpu_custom_call.1}
  #allocation0 [shape = 'u32[]', space=smem, size = 0x4, offset = 0x4, fixed_abs, tag = 'smem constant byte address 0x4 - core index']
  #allocation1 [shape = 'u32[144,128]{1,0:T(1,128)}', space=vmem, size = 0x12000, scoped, tag = 'internal scratch']
  %s0 = inlined_call_operand.vmem [shape: f32[2,2,512], index: 0, kind: input, shape index: {}]
  %s1 = inlined_call_operand.vmem [shape: f32[32,2], index: 1, kind: input, shape index: {}]
  %s2 = inlined_call_operand.vmem [shape: f32[32,1], index: 2, kind: input, shape index: {}]
  %s3 = inlined_call_operand.vmem [shape: f32[32,1], index: 3, kind: input, shape index: {}]
  %s4 = inlined_call_operand.vmem [shape: f32[32,1], index: 4, kind: input, shape index: {}]
  %s5 = inlined_call_operand.vmem [shape: f32[64,32], index: 5, kind: input, shape index: {}]
  %s6 = inlined_call_operand.vmem [shape: f32[64,1], index: 6, kind: input, shape index: {}]
  %s7 = inlined_call_operand.vmem [shape: f32[64,1], index: 7, kind: input, shape index: {}]
  %s8 = inlined_call_operand.vmem [shape: f32[64,1], index: 8, kind: input, shape index: {}]
  %s9 = inlined_call_operand.vmem [shape: f32[128,64], index: 9, kind: input, shape index: {}]
  %s10 = inlined_call_operand.vmem [shape: f32[128,1], index: 10, kind: input, shape index: {}]
  %s11 = inlined_call_operand.hbm [shape: f32[2,128,512], index: 11, kind: output, shape index: {}]
  %s12 = sld [smem:[#allocation0]]
  $region77: #{tpu_custom_call.1} parent=0
    _
  %s14 = ssub.s32 1, %s12
  %s15 = scalar_select 0, %s14, %s12
  $region1: #{tpu_custom_call.1} parent=0
    #allocation2 [shape = 'u8[524288]{0}', space=vmem, size = 0x80000, scoped, tag = 'output window, operand 0']
    #allocation3 [shape = 's32[2]{0}', space=sflag, size = 0x8, scoped, tag = 'scoped memory for tpu_custom_call.1']
    %16 = vsyncpa [#allocation3], 0
    %s17 = scalar_lea.sflag [#allocation3], 1
    %18 = vsyncpa %s17, 0
    loop: start=0, step=1, limit=4
    $region2: #{tpu_custom_call.1} parent=1 // loop_pre_header
      _
    $region3: #{tpu_custom_call.1} parent=1 // loop_header
      %s20 = sphi 0, %s24
      %p21 = scmp.ge.s32.totalorder %s20, 4
      %s27 = sphi 0, %s39
      %s28 = sphi 0, %s35
      %s29 = sphi 0, %s27
      %s30 = sphi 0, %s28
      %s31 = sphi 0, %s29
      %s32 = sphi 0, %s30
      %s44 = sphi 0, %s46
      %s47 = sphi 0, %s44
      %s48 = sphi 0, %s47
      %s64 = sphi 0, %s48
      %s68 = sphi 0, %s68
      %s70 = sphi 0, %s68
      %s71 = sphi 0, %s70
      %s85 = sphi 0, %s71
      %s89 = sphi 0, %s89
      %s91 = sphi 0, %s89
      %s92 = sphi 0, %s91
      %s106 = sphi 0, %s92
      %s110 = sphi 0, %s110
      %s112 = sphi 0, %s110
      %s113 = sphi 0, %s112
      %s127 = sphi 0, %s113
      %s131 = sphi 0, %s131
      %s133 = sphi 0, %s131
      %s134 = sphi 0, %s133
      %s148 = sphi 0, %s134
      %s152 = sphi 0, %s152
      %s154 = sphi 0, %s152
      %s155 = sphi 0, %s154
      %s169 = sphi 0, %s155
      %s173 = sphi 0, %s173
      %s175 = sphi 0, %s173
      %s176 = sphi 0, %s175
      %s190 = sphi 0, %s176
      %s194 = sphi 0, %s194
      %s196 = sphi 0, %s194
      %s197 = sphi 0, %s196
      %s211 = sphi 0, %s197
      %s215 = sphi 0, %s215
      %s217 = sphi 0, %s215
      %s218 = sphi 0, %s217
      %s232 = sphi 0, %s218
      %s236 = sphi 0, %s236
      %s238 = sphi 0, %s236
      %s239 = sphi 0, %s238
      %s253 = sphi 0, %s239
      %s257 = sphi 0, %s257
      %s259 = sphi 0, %s257
      %s260 = sphi 0, %s259
      %s274 = sphi 0, %s260
      %s282 = sphi 0, %s284
      %s285 = sphi 0, %s282
      %s286 = sphi 0, %s285
      %s302 = sphi 0, %s286
    $region4: #{tpu_custom_call.1} parent=1 // loop_header_branch
      %23 = sbr.rel (%p21) target = $region8
    $region5: #{tpu_custom_call.1} parent=1 // loop_body
      %s25 = ssub.s32 %s20, 1
      %s26 = ssub.s32 %s20, 2
      %s33 = sadd.s32 1, %s28
      %p34 = scmp.ge.s32.totalorder %s33, 1
      %s35 = scalar_select %p34, 0, %s33
      %s36 = sadd.s32 1, %s27
      %s37 = scalar_select %p34, %s36, %s27
      %p38 = scmp.ge.s32.totalorder %s37, 2
      %s39 = scalar_select %p38, 0, %s37
      %s40 = ssub.s32 %s27, %s39
      %s41 = ssub.s32 %s28, %s35
      %s42 = sor.u32 %s40, %s41
      %p43 = scmp.eq.s32.totalorder %s42, 0
      %s45 = sadd.s32 %s44, 1
      %s46 = scalar_select %p43, %s44, %s45
      %p49 = pneg %p43
      %p50 = scmp.eq.s32.totalorder %s20, 1
      %p51 = por %p49, %p50
      %p52 = scmp.ne.s32.totalorder %s44, %s47
      %p53 = scmp.eq.s32.totalorder %s20, 0
      %p54 = por %p52, %p53
      %p55 = scmp.ne.s32.totalorder %s44, %s47
      %p56 = scmp.eq.s32.totalorder %s25, 1
      %p57 = por %p55, %p56
      %p58 = scmp.ne.s32.totalorder %s47, %s48
      %p59 = scmp.eq.s32.totalorder %s25, 0
      %p60 = por %p58, %p59
      %p61 = scmp.ne.s32.totalorder %s47, %s48
      %p62 = scmp.eq.s32.totalorder %s26, 1
      %p63 = por %p61, %p62
      %p65 = scmp.ne.s32.totalorder %s48, %s64
      %p66 = scmp.eq.s32.totalorder %s26, 0
      %p67 = por %p65, %p66
      %s69 = sadd.s32 %s68, 1
      %p72 = scmp.eq.s32.totalorder %s20, 1
      %p73 = scmp.ne.s32.totalorder %s68, %s70
      %p74 = scmp.eq.s32.totalorder %s20, 0
      %p75 = por %p73, %p74
      %p76 = scmp.ne.s32.totalorder %s68, %s70
      %p77 = scmp.eq.s32.totalorder %s25, 1
      %p78 = por %p76, %p77
      %p79 = scmp.ne.s32.totalorder %s70, %s71
      %p80 = scmp.eq.s32.totalorder %s25, 0
      %p81 = por %p79, %p80
      %p82 = scmp.ne.s32.totalorder %s70, %s71
      %p83 = scmp.eq.s32.totalorder %s26, 1
      %p84 = por %p82, %p83
      %p86 = scmp.ne.s32.totalorder %s71, %s85
      %p87 = scmp.eq.s32.totalorder %s26, 0
      %p88 = por %p86, %p87
      %s90 = sadd.s32 %s89, 1
      %p93 = scmp.eq.s32.totalorder %s20, 1
      %p94 = scmp.ne.s32.totalorder %s89, %s91
      %p95 = scmp.eq.s32.totalorder %s20, 0
      %p96 = por %p94, %p95
      %p97 = scmp.ne.s32.totalorder %s89, %s91
      %p98 = scmp.eq.s32.totalorder %s25, 1
      %p99 = por %p97, %p98
      %p100 = scmp.ne.s32.totalorder %s91, %s92
      %p101 = scmp.eq.s32.totalorder %s25, 0
      %p102 = por %p100, %p101
      %p103 = scmp.ne.s32.totalorder %s91, %s92
      %p104 = scmp.eq.s32.totalorder %s26, 1
      %p105 = por %p103, %p104
      %p107 = scmp.ne.s32.totalorder %s92, %s106
      %p108 = scmp.eq.s32.totalorder %s26, 0
      %p109 = por %p107, %p108
      %s111 = sadd.s32 %s110, 1
      %p114 = scmp.eq.s32.totalorder %s20, 1
      %p115 = scmp.ne.s32.totalorder %s110, %s112
      %p116 = scmp.eq.s32.totalorder %s20, 0
      %p117 = por %p115, %p116
      %p118 = scmp.ne.s32.totalorder %s110, %s112
      %p119 = scmp.eq.s32.totalorder %s25, 1
      %p120 = por %p118, %p119
      %p121 = scmp.ne.s32.totalorder %s112, %s113
      %p122 = scmp.eq.s32.totalorder %s25, 0
      %p123 = por %p121, %p122
      %p124 = scmp.ne.s32.totalorder %s112, %s113
      %p125 = scmp.eq.s32.totalorder %s26, 1
      %p126 = por %p124, %p125
      %p128 = scmp.ne.s32.totalorder %s113, %s127
      %p129 = scmp.eq.s32.totalorder %s26, 0
      %p130 = por %p128, %p129
      %s132 = sadd.s32 %s131, 1
      %p135 = scmp.eq.s32.totalorder %s20, 1
      %p136 = scmp.ne.s32.totalorder %s131, %s133
      %p137 = scmp.eq.s32.totalorder %s20, 0
      %p138 = por %p136, %p137
      %p139 = scmp.ne.s32.totalorder %s131, %s133
      %p140 = scmp.eq.s32.totalorder %s25, 1
      %p141 = por %p139, %p140
      %p142 = scmp.ne.s32.totalorder %s133, %s134
      %p143 = scmp.eq.s32.totalorder %s25, 0
      %p144 = por %p142, %p143
      %p145 = scmp.ne.s32.totalorder %s133, %s134
      %p146 = scmp.eq.s32.totalorder %s26, 1
      %p147 = por %p145, %p146
      %p149 = scmp.ne.s32.totalorder %s134, %s148
      %p150 = scmp.eq.s32.totalorder %s26, 0
      %p151 = por %p149, %p150
      %s153 = sadd.s32 %s152, 1
      %p156 = scmp.eq.s32.totalorder %s20, 1
      %p157 = scmp.ne.s32.totalorder %s152, %s154
      %p158 = scmp.eq.s32.totalorder %s20, 0
      %p159 = por %p157, %p158
      %p160 = scmp.ne.s32.totalorder %s152, %s154
      %p161 = scmp.eq.s32.totalorder %s25, 1
      %p162 = por %p160, %p161
      %p163 = scmp.ne.s32.totalorder %s154, %s155
      %p164 = scmp.eq.s32.totalorder %s25, 0
      %p165 = por %p163, %p164
      %p166 = scmp.ne.s32.totalorder %s154, %s155
      %p167 = scmp.eq.s32.totalorder %s26, 1
      %p168 = por %p166, %p167
      %p170 = scmp.ne.s32.totalorder %s155, %s169
      %p171 = scmp.eq.s32.totalorder %s26, 0
      %p172 = por %p170, %p171
      %s174 = sadd.s32 %s173, 1
      %p177 = scmp.eq.s32.totalorder %s20, 1
      %p178 = scmp.ne.s32.totalorder %s173, %s175
      %p179 = scmp.eq.s32.totalorder %s20, 0
      %p180 = por %p178, %p179
      %p181 = scmp.ne.s32.totalorder %s173, %s175
      %p182 = scmp.eq.s32.totalorder %s25, 1
      %p183 = por %p181, %p182
      %p184 = scmp.ne.s32.totalorder %s175, %s176
      %p185 = scmp.eq.s32.totalorder %s25, 0
      %p186 = por %p184, %p185
      %p187 = scmp.ne.s32.totalorder %s175, %s176
      %p188 = scmp.eq.s32.totalorder %s26, 1
      %p189 = por %p187, %p188
      %p191 = scmp.ne.s32.totalorder %s176, %s190
      %p192 = scmp.eq.s32.totalorder %s26, 0
      %p193 = por %p191, %p192
      %s195 = sadd.s32 %s194, 1
      %p198 = scmp.eq.s32.totalorder %s20, 1
      %p199 = scmp.ne.s32.totalorder %s194, %s196
      %p200 = scmp.eq.s32.totalorder %s20, 0
      %p201 = por %p199, %p200
      %p202 = scmp.ne.s32.totalorder %s194, %s196
      %p203 = scmp.eq.s32.totalorder %s25, 1
      %p204 = por %p202, %p203
      %p205 = scmp.ne.s32.totalorder %s196, %s197
      %p206 = scmp.eq.s32.totalorder %s25, 0
      %p207 = por %p205, %p206
      %p208 = scmp.ne.s32.totalorder %s196, %s197
      %p209 = scmp.eq.s32.totalorder %s26, 1
      %p210 = por %p208, %p209
      %p212 = scmp.ne.s32.totalorder %s197, %s211
      %p213 = scmp.eq.s32.totalorder %s26, 0
      %p214 = por %p212, %p213
      %s216 = sadd.s32 %s215, 1
      %p219 = scmp.eq.s32.totalorder %s20, 1
      %p220 = scmp.ne.s32.totalorder %s215, %s217
      %p221 = scmp.eq.s32.totalorder %s20, 0
      %p222 = por %p220, %p221
      %p223 = scmp.ne.s32.totalorder %s215, %s217
      %p224 = scmp.eq.s32.totalorder %s25, 1
      %p225 = por %p223, %p224
      %p226 = scmp.ne.s32.totalorder %s217, %s218
      %p227 = scmp.eq.s32.totalorder %s25, 0
      %p228 = por %p226, %p227
      %p229 = scmp.ne.s32.totalorder %s217, %s218
      %p230 = scmp.eq.s32.totalorder %s26, 1
      %p231 = por %p229, %p230
      %p233 = scmp.ne.s32.totalorder %s218, %s232
      %p234 = scmp.eq.s32.totalorder %s26, 0
      %p235 = por %p233, %p234
      %s237 = sadd.s32 %s236, 1
      %p240 = scmp.eq.s32.totalorder %s20, 1
      %p241 = scmp.ne.s32.totalorder %s236, %s238
      %p242 = scmp.eq.s32.totalorder %s20, 0
      %p243 = por %p241, %p242
      %p244 = scmp.ne.s32.totalorder %s236, %s238
      %p245 = scmp.eq.s32.totalorder %s25, 1
      %p246 = por %p244, %p245
      %p247 = scmp.ne.s32.totalorder %s238, %s239
      %p248 = scmp.eq.s32.totalorder %s25, 0
      %p249 = por %p247, %p248
      %p250 = scmp.ne.s32.totalorder %s238, %s239
      %p251 = scmp.eq.s32.totalorder %s26, 1
      %p252 = por %p250, %p251
      %p254 = scmp.ne.s32.totalorder %s239, %s253
      %p255 = scmp.eq.s32.totalorder %s26, 0
      %p256 = por %p254, %p255
      %s258 = sadd.s32 %s257, 1
      %p261 = scmp.eq.s32.totalorder %s20, 1
      %p262 = scmp.ne.s32.totalorder %s257, %s259
      %p263 = scmp.eq.s32.totalorder %s20, 0
      %p264 = por %p262, %p263
      %p265 = scmp.ne.s32.totalorder %s257, %s259
      %p266 = scmp.eq.s32.totalorder %s25, 1
      %p267 = por %p265, %p266
      %p268 = scmp.ne.s32.totalorder %s259, %s260
      %p269 = scmp.eq.s32.totalorder %s25, 0
      %p270 = por %p268, %p269
      %p271 = scmp.ne.s32.totalorder %s259, %s260
      %p272 = scmp.eq.s32.totalorder %s26, 1
      %p273 = por %p271, %p272
      %p275 = scmp.ne.s32.totalorder %s260, %s274
      %p276 = scmp.eq.s32.totalorder %s26, 0
      %p277 = por %p275, %p276
      %s278 = ssub.s32 %s27, %s39
      %s279 = ssub.s32 %s28, %s35
      %s280 = sor.u32 %s278, %s279
      %p281 = scmp.eq.s32.totalorder %s280, 0
      %s283 = sadd.s32 %s282, 1
      %s284 = scalar_select %p281, %s282, %s283
      %p287 = pneg %p281
      %p288 = scmp.eq.s32.totalorder %s20, 1
      %p289 = por %p287, %p288
      %p290 = scmp.ne.s32.totalorder %s282, %s285
      %p291 = scmp.eq.s32.totalorder %s20, 0
      %p292 = por %p290, %p291
      %p293 = scmp.ne.s32.totalorder %s282, %s285
      %p294 = scmp.eq.s32.totalorder %s25, 1
      %p295 = por %p293, %p294
      %p296 = scmp.ne.s32.totalorder %s285, %s286
      %p297 = scmp.eq.s32.totalorder %s25, 0
      %p298 = por %p296, %p297
      %p299 = scmp.ne.s32.totalorder %s285, %s286
      %p300 = scmp.eq.s32.totalorder %s26, 1
      %p301 = por %p299, %p300
      %p303 = scmp.ne.s32.totalorder %s286, %s302
      %p304 = scmp.eq.s32.totalorder %s26, 0
      %p305 = por %p303, %p304
      %p306 = scmp.le.s32.totalorder 1, %s20
      %p307 = scmp.lt.s32.totalorder %s20, 3
      %p308 = pnand %p306, %p307
      %p309 = pneg %p308
      // Predicated region
      $region9: #{tpu_custom_call.1} parent=5 // pred_check
        _
      $region10: #{tpu_custom_call.1} parent=5 // pred_check_branch
        %311 = sbr.rel (%p308) target = $region12
      $region11: #{tpu_custom_call.1} parent=5 // pred_region
        %s312 = ssub.s32 %s20, 1
        // Predicated region
        $region13: #{tpu_custom_call.1} parent=11 // pred_check
          %p313 = pneg %p81
        $region14: #{tpu_custom_call.1} parent=11 // pred_check_branch
          %315 = sbr.rel (%p313) target = $region16
        $region15: #{tpu_custom_call.1} parent=11 // pred_region
          _
        $region16: #{tpu_custom_call.1} parent=11 // pred_fallthru
          _
        // Predicated region
        $region17: #{tpu_custom_call.1} parent=11 // pred_check
          %p316 = pneg %p102
        $region18: #{tpu_custom_call.1} parent=11 // pred_check_branch
          %318 = sbr.rel (%p316) target = $region20
        $region19: #{tpu_custom_call.1} parent=11 // pred_region
          _
        $region20: #{tpu_custom_call.1} parent=11 // pred_fallthru
          _
        // Predicated region
        $region21: #{tpu_custom_call.1} parent=11 // pred_check
          %p319 = pneg %p123
        $region22: #{tpu_custom_call.1} parent=11 // pred_check_branch
          %321 = sbr.rel (%p319) target = $region24
        $region23: #{tpu_custom_call.1} parent=11 // pred_region
          _
        $region24: #{tpu_custom_call.1} parent=11 // pred_fallthru
          _
        // Predicated region
        $region25: #{tpu_custom_call.1} parent=11 // pred_check
          %p322 = pneg %p144
        $region26: #{tpu_custom_call.1} parent=11 // pred_check_branch
          %324 = sbr.rel (%p322) target = $region28
        $region27: #{tpu_custom_call.1} parent=11 // pred_region
          _
        $region28: #{tpu_custom_call.1} parent=11 // pred_fallthru
          _
        // Predicated region
        $region29: #{tpu_custom_call.1} parent=11 // pred_check
          %p325 = pneg %p165
        $region30: #{tpu_custom_call.1} parent=11 // pred_check_branch
          %327 = sbr.rel (%p325) target = $region32
        $region31: #{tpu_custom_call.1} parent=11 // pred_region
          _
        $region32: #{tpu_custom_call.1} parent=11 // pred_fallthru
          _
        // Predicated region
        $region33: #{tpu_custom_call.1} parent=11 // pred_check
          %p328 = pneg %p186
        $region34: #{tpu_custom_call.1} parent=11 // pred_check_branch
          %330 = sbr.rel (%p328) target = $region36
        $region35: #{tpu_custom_call.1} parent=11 // pred_region
          _
        $region36: #{tpu_custom_call.1} parent=11 // pred_fallthru
          _
        // Predicated region
        $region37: #{tpu_custom_call.1} parent=11 // pred_check
          %p331 = pneg %p207
        $region38: #{tpu_custom_call.1} parent=11 // pred_check_branch
          %333 = sbr.rel (%p331) target = $region40
        $region39: #{tpu_custom_call.1} parent=11 // pred_region
          _
        $region40: #{tpu_custom_call.1} parent=11 // pred_fallthru
          _
        // Predicated region
        $region41: #{tpu_custom_call.1} parent=11 // pred_check
          %p334 = pneg %p228
        $region42: #{tpu_custom_call.1} parent=11 // pred_check_branch
          %336 = sbr.rel (%p334) target = $region44
        $region43: #{tpu_custom_call.1} parent=11 // pred_region
          _
        $region44: #{tpu_custom_call.1} parent=11 // pred_fallthru
          _
        // Predicated region
        $region45: #{tpu_custom_call.1} parent=11 // pred_check
          %p337 = pneg %p249
        $region46: #{tpu_custom_call.1} parent=11 // pred_check_branch
          %339 = sbr.rel (%p337) target = $region48
        $region47: #{tpu_custom_call.1} parent=11 // pred_region
          _
        $region48: #{tpu_custom_call.1} parent=11 // pred_fallthru
          _
        // Predicated region
        $region49: #{tpu_custom_call.1} parent=11 // pred_check
          %p340 = pneg %p270
        $region50: #{tpu_custom_call.1} parent=11 // pred_check_branch
          %342 = sbr.rel (%p340) target = $region52
        $region51: #{tpu_custom_call.1} parent=11 // pred_region
          _
        $region52: #{tpu_custom_call.1} parent=11 // pred_fallthru
          _
      $region12: #{tpu_custom_call.1} parent=5 // pred_fallthru
        _
      %p343 = scmp.lt.s32.totalorder %s20, 2
      // Predicated region
      $region53: #{tpu_custom_call.1} parent=5 // pred_check
        %p344 = pneg %p343
      $region54: #{tpu_custom_call.1} parent=5 // pred_check_branch
        %346 = sbr.rel (%p344) target = $region56
      $region55: #{tpu_custom_call.1} parent=5 // pred_region
        // Predicated region
        $region57: #{tpu_custom_call.1} parent=55 // pred_check
          %p347 = pneg %p54
        $region58: #{tpu_custom_call.1} parent=55 // pred_check_branch
          %349 = sbr.rel (%p347) target = $region60
        $region59: #{tpu_custom_call.1} parent=55 // pred_region
          %s350 = smul.u32 4, %s28
          %p351 = scmp.lt.s32.totalorder %s27, 1
          %s352 = scalar_select %p351, %s27, 1
          %p353 = scmp.lt.s32.totalorder %s350, 3
          %s354 = scalar_select %p353, %s350, 3
          %s355 = smul.addr %s352, 4
          %s356 = sadd.s32 %s354, %s355
          %s357 = smul.addr %s356, 2
          %s358 = scalar_lea.vmem %s0, %s357
          %s359 = smul.u32 4, %s28
        $region60: #{tpu_custom_call.1} parent=55 // pred_fallthru
          _
      $region56: #{tpu_custom_call.1} parent=5 // pred_fallthru
        _
      %p360 = scmp.le.s32.totalorder 1, %s20
      %p361 = scmp.lt.s32.totalorder %s20, 3
      %p362 = pnand %p360, %p361
      %p363 = pneg %p362
      // Predicated region
      $region61: #{tpu_custom_call.1} parent=5 // pred_check
        _
      $region62: #{tpu_custom_call.1} parent=5 // pred_check_branch
        %365 = sbr.rel (%p362) target = $region64
      $region63: #{tpu_custom_call.1} parent=5 // pred_region
        %s366 = ssub.s32 %s20, 1
        %s367 = smul.u32 4, %s30
        %p368 = scmp.lt.s32.totalorder %s29, 1
        %s369 = scalar_select %p368, %s29, 1
        %p370 = scmp.lt.s32.totalorder %s367, 3
        %s371 = scalar_select %p370, %s367, 3
        %s372 = smul.addr %s369, 4
        %s373 = sadd.s32 %s371, %s372
        %s374 = smul.addr %s373, 2
        %s375 = scalar_lea.vmem %s0, %s374
        %p376 = pneg %p60
        %p377 = pneg %p57
        %p378 = pneg %p81
        %p379 = pneg %p78
        %p380 = pneg %p102
        %p381 = pneg %p99
        %p382 = pneg %p123
        %p383 = pneg %p120
        %p384 = pneg %p144
        %p385 = pneg %p141
        %p386 = pneg %p165
        %p387 = pneg %p162
        %p388 = pneg %p186
        %p389 = pneg %p183
        %p390 = pneg %p207
        %p391 = pneg %p204
        %p392 = pneg %p228
        %p393 = pneg %p225
        %p394 = pneg %p249
        %p395 = pneg %p246
        %p396 = pneg %p270
        %p397 = pneg %p267
        %p398 = pneg %p298
        %p399 = pneg %p295
        %s400 = sand.u32 %s285, 1
        %s401 = scalar_lea.sflag [#allocation3], %s400
        %s402 = sand.u32 %s285, 1
        %s403 = smul.addr %s402, 512
        %s404 = scalar_lea.vmem [#allocation2], %s403
        %s405 = smul.u32 4, %s30
        %p406 = scmp.lt.s32.totalorder %s29, 1
        %s407 = scalar_select %p406, %s29, 1
        %p408 = scmp.lt.s32.totalorder %s405, 3
        %s409 = scalar_select %p408, %s405, 3
        %s410 = smul.addr %s407, 4
        %s411 = sadd.s32 %s409, %s410
        %s412 = smul.addr %s411, 2
        %s413 = scalar_lea.vmem %s0, %s412
        %s414 = smul.u32 4, %s30
        %s415 = smul.u32 4, %s30
        %v416 = vld [vmem:[%s413] sm:$0xff]
        %v417 = vld [vmem:[%s1] sm:$0xff]
        %v418 = vld [vmem:[%s1 + $0x8] sm:$0xff]
        %v419 = vld [vmem:[%s1 + $0x10] sm:$0xff]
        %v420 = vld [vmem:[%s1 + $0x18] sm:$0xff]
        %v421 = vld [vmem:[%s2] sm:$0xff]
        %v422 = vld [vmem:[%s2 + $0x8] sm:$0xff]
        %v423 = vld [vmem:[%s2 + $0x10] sm:$0xff]
        %v424 = vld [vmem:[%s2 + $0x18] sm:$0xff]
        %426 = vset.pattern.permute.xlu0 0
        %427 = vperm.xlu0 %426, %v421
        %v428 = vpop.permute.xlu0 %427
        %431 = vset.pattern.permute.xlu0 0
        %432 = vperm.xlu0 %431, %v422
        %v433 = vpop.permute.xlu0 %432
        %436 = vset.pattern.permute.xlu0 0
        %437 = vperm.xlu0 %436, %v423
        %v438 = vpop.permute.xlu0 %437
        %441 = vset.pattern.permute.xlu0 0
        %442 = vperm.xlu0 %441, %v424
        %v443 = vpop.permute.xlu0 %442
        %446 = vset.pattern.permute.xlu0 0
        %447 = vperm.xlu0 %446, %v417
        %v448 = vpop.permute.xlu0 %447
        %451 = vset.pattern.permute.xlu0 0
        %452 = vperm.xlu0 %451, %v418
        %v453 = vpop.permute.xlu0 %452
        %456 = vset.pattern.permute.xlu0 0
        %457 = vperm.xlu0 %456, %v419
        %v458 = vpop.permute.xlu0 %457
        %461 = vset.pattern.permute.xlu0 0
        %462 = vperm.xlu0 %461, %v420
        %v463 = vpop.permute.xlu0 %462
        %v466 = vlaneseq
        %v467 = vshrl.u32 %v466, 7
        %v468 = vsub.s32 0, %v467
        %v469 = vrot.slane %v416, %v468
        %v470 = vlaneseq
        %v471 = vshrl.u32 %v470, 7
        %v472 = vsub.s32 2, %v471
        %v473 = vrot.slane %v416, %v472
        %v474 = vlaneseq
        %v475 = vshrl.u32 %v474, 7
        %v476 = vsub.s32 4, %v475
        %v477 = vrot.slane %v416, %v476
        %v478 = vlaneseq
        %v479 = vshrl.u32 %v478, 7
        %v480 = vsub.s32 6, %v479
        %v481 = vrot.slane %v416, %v480
        %v486 = vlaneseq
        %v487 = vshrl.u32 %v486, 7
        %v488 = vsub.s32 0, %v487
        %v489 = vrot.slane %v469, %v488
        %v490 = vlaneseq
        %v491 = vshrl.u32 %v490, 7
        %v492 = vsub.s32 0, %v491
        %v493 = vrot.slane %v473, %v492
        %v494 = vlaneseq
        %v495 = vshrl.u32 %v494, 7
        %v496 = vsub.s32 0, %v495
        %v497 = vrot.slane %v477, %v496
        %v498 = vlaneseq
        %v499 = vshrl.u32 %v498, 7
        %v500 = vsub.s32 0, %v499
        %v501 = vrot.slane %v481, %v500
        %v502 = vmul.f32 %v448, %v489
        %v503 = vmul.f32 %v448, %v493
        %v504 = vmul.f32 %v448, %v497
        %v505 = vmul.f32 %v448, %v501
        %v506 = vmul.f32 %v453, %v489
        %v507 = vmul.f32 %v453, %v493
        %v508 = vmul.f32 %v453, %v497
        %v509 = vmul.f32 %v453, %v501
        %v510 = vmul.f32 %v458, %v489
        %v511 = vmul.f32 %v458, %v493
        %v512 = vmul.f32 %v458, %v497
        %v513 = vmul.f32 %v458, %v501
        %v514 = vmul.f32 %v463, %v489
        %v515 = vmul.f32 %v463, %v493
        %v516 = vmul.f32 %v463, %v497
        %v517 = vmul.f32 %v463, %v501
        %v518 = vadd.f32 %v428, %v502
        %v519 = vadd.f32 %v428, %v503
        %v520 = vadd.f32 %v428, %v504
        %v521 = vadd.f32 %v428, %v505
        %v522 = vadd.f32 %v433, %v506
        %v523 = vadd.f32 %v433, %v507
        %v524 = vadd.f32 %v433, %v508
        %v525 = vadd.f32 %v433, %v509
        %v526 = vadd.f32 %v438, %v510
        %v527 = vadd.f32 %v438, %v511
        %v528 = vadd.f32 %v438, %v512
        %v529 = vadd.f32 %v438, %v513
        %v530 = vadd.f32 %v443, %v514
        %v531 = vadd.f32 %v443, %v515
        %v532 = vadd.f32 %v443, %v516
        %v533 = vadd.f32 %v443, %v517
        %534 = vset.pattern.permute.xlu0 1
        %535 = vperm.xlu0 %534, %v417
        %v536 = vpop.permute.xlu0 %535
        %538 = vset.pattern.permute.xlu0 1
        %539 = vperm.xlu0 %538, %v418
        %v540 = vpop.permute.xlu0 %539
        %542 = vset.pattern.permute.xlu0 1
        %543 = vperm.xlu0 %542, %v419
        %v544 = vpop.permute.xlu0 %543
        %546 = vset.pattern.permute.xlu0 1
        %547 = vperm.xlu0 %546, %v420
        %v548 = vpop.permute.xlu0 %547
        %v550 = vlaneseq
        %v551 = vshrl.u32 %v550, 7
        %v552 = vsub.s32 1, %v551
        %v553 = vrot.slane %v416, %v552
        %v554 = vlaneseq
        %v555 = vshrl.u32 %v554, 7
        %v556 = vsub.s32 3, %v555
        %v557 = vrot.slane %v416, %v556
        %v558 = vlaneseq
        %v559 = vshrl.u32 %v558, 7
        %v560 = vsub.s32 5, %v559
        %v561 = vrot.slane %v416, %v560
        %v562 = vlaneseq
        %v563 = vshrl.u32 %v562, 7
        %v564 = vsub.s32 7, %v563
        %v565 = vrot.slane %v416, %v564
        %v570 = vlaneseq
        %v571 = vshrl.u32 %v570, 7
        %v572 = vsub.s32 1, %v571
        %v573 = vrot.slane %v553, %v572
        %v574 = vlaneseq
        %v575 = vshrl.u32 %v574, 7
        %v576 = vsub.s32 1, %v575
        %v577 = vrot.slane %v557, %v576
        %v578 = vlaneseq
        %v579 = vshrl.u32 %v578, 7
        %v580 = vsub.s32 1, %v579
        %v581 = vrot.slane %v561, %v580
        %v582 = vlaneseq
        %v583 = vshrl.u32 %v582, 7
        %v584 = vsub.s32 1, %v583
        %v585 = vrot.slane %v565, %v584
        %v586 = vmul.f32 %v536, %v573
        %v587 = vmul.f32 %v536, %v577
        %v588 = vmul.f32 %v536, %v581
        %v589 = vmul.f32 %v536, %v585
        %v590 = vmul.f32 %v540, %v573
        %v591 = vmul.f32 %v540, %v577
        %v592 = vmul.f32 %v540, %v581
        %v593 = vmul.f32 %v540, %v585
        %v594 = vmul.f32 %v544, %v573
        %v595 = vmul.f32 %v544, %v577
        %v596 = vmul.f32 %v544, %v581
        %v597 = vmul.f32 %v544, %v585
        %v598 = vmul.f32 %v548, %v573
        %v599 = vmul.f32 %v548, %v577
        %v600 = vmul.f32 %v548, %v581
        %v601 = vmul.f32 %v548, %v585
        %v602 = vadd.f32 %v518, %v586
        %v603 = vadd.f32 %v519, %v587
        %v604 = vadd.f32 %v520, %v588
        %v605 = vadd.f32 %v521, %v589
        %v606 = vadd.f32 %v522, %v590
        %v607 = vadd.f32 %v523, %v591
        %v608 = vadd.f32 %v524, %v592
        %v609 = vadd.f32 %v525, %v593
        %v610 = vadd.f32 %v526, %v594
        %v611 = vadd.f32 %v527, %v595
        %v612 = vadd.f32 %v528, %v596
        %v613 = vadd.f32 %v529, %v597
        %v614 = vadd.f32 %v530, %v598
        %v615 = vadd.f32 %v531, %v599
        %v616 = vadd.f32 %v532, %v600
        %v617 = vadd.f32 %v533, %v601
        %v618 = vld [vmem:[%s3] sm:$0xff]
        %v619 = vld [vmem:[%s3 + $0x8] sm:$0xff]
        %v620 = vld [vmem:[%s3 + $0x10] sm:$0xff]
        %v621 = vld [vmem:[%s3 + $0x18] sm:$0xff]
        %v622 = vld [vmem:[%s4] sm:$0xff]
        %v623 = vld [vmem:[%s4 + $0x8] sm:$0xff]
        %v624 = vld [vmem:[%s4 + $0x10] sm:$0xff]
        %v625 = vld [vmem:[%s4 + $0x18] sm:$0xff]
        %v626 = vadd.f32 %v602, %v606
        %v627 = vadd.f32 %v626, %v610
        %v628 = vadd.f32 %v627, %v614
        %v629 = vrot.slane %v628, 4
        %v630 = vadd.f32 %v628, %v629
        %v631 = vrot.slane %v630, 2
        %v632 = vadd.f32 %v630, %v631
        %v633 = vrot.slane %v632, 1
        %v634 = vadd.f32 %v632, %v633
        %v635 = vadd.f32 %v603, %v607
        %v636 = vadd.f32 %v635, %v611
        %v637 = vadd.f32 %v636, %v615
        %v638 = vrot.slane %v637, 4
        %v639 = vadd.f32 %v637, %v638
        %v640 = vrot.slane %v639, 2
        %v641 = vadd.f32 %v639, %v640
        %v642 = vrot.slane %v641, 1
        %v643 = vadd.f32 %v641, %v642
        %v644 = vadd.f32 %v604, %v608
        %v645 = vadd.f32 %v644, %v612
        %v646 = vadd.f32 %v645, %v616
        %v647 = vrot.slane %v646, 4
        %v648 = vadd.f32 %v646, %v647
        %v649 = vrot.slane %v648, 2
        %v650 = vadd.f32 %v648, %v649
        %v651 = vrot.slane %v650, 1
        %v652 = vadd.f32 %v650, %v651
        %v653 = vadd.f32 %v605, %v609
        %v654 = vadd.f32 %v653, %v613
        %v655 = vadd.f32 %v654, %v617
        %v656 = vrot.slane %v655, 4
        %v657 = vadd.f32 %v655, %v656
        %v658 = vrot.slane %v657, 2
        %v659 = vadd.f32 %v657, %v658
        %v660 = vrot.slane %v659, 1
        %v661 = vadd.f32 %v659, %v660
        %v662 = vrcp.pop 32.0
        %v663 = vmul.f32 %v634, %v662
        %v664 = vmul.f32 %v643, %v662
        %v665 = vmul.f32 %v652, %v662
        %v666 = vmul.f32 %v661, %v662
        %v667 = vsub.f32 %v602, %v663
        %v668 = vsub.f32 %v603, %v664
        %v669 = vsub.f32 %v604, %v665
        %v670 = vsub.f32 %v605, %v666
        %v671 = vsub.f32 %v606, %v663
        %v672 = vsub.f32 %v607, %v664
        %v673 = vsub.f32 %v608, %v665
        %v674 = vsub.f32 %v609, %v666
        %v675 = vsub.f32 %v610, %v663
        %v676 = vsub.f32 %v611, %v664
        %v677 = vsub.f32 %v612, %v665
        %v678 = vsub.f32 %v613, %v666
        %v679 = vsub.f32 %v614, %v663
        %v680 = vsub.f32 %v615, %v664
        %v681 = vsub.f32 %v616, %v665
        %v682 = vsub.f32 %v617, %v666
        %v683 = vmul.f32 %v667, %v667
        %v684 = vmul.f32 %v668, %v668
        %v685 = vmul.f32 %v669, %v669
        %v686 = vmul.f32 %v670, %v670
        %v687 = vmul.f32 %v671, %v671
        %v688 = vmul.f32 %v672, %v672
        %v689 = vmul.f32 %v673, %v673
        %v690 = vmul.f32 %v674, %v674
        %v691 = vmul.f32 %v675, %v675
        %v692 = vmul.f32 %v676, %v676
        %v693 = vmul.f32 %v677, %v677
        %v694 = vmul.f32 %v678, %v678
        %v695 = vmul.f32 %v679, %v679
        %v696 = vmul.f32 %v680, %v680
        %v697 = vmul.f32 %v681, %v681
        %v698 = vmul.f32 %v682, %v682
        %v699 = vadd.f32 %v683, %v687
        %v700 = vadd.f32 %v699, %v691
        %v701 = vadd.f32 %v700, %v695
        %v702 = vrot.slane %v701, 4
        %v703 = vadd.f32 %v701, %v702
        %v704 = vrot.slane %v703, 2
        %v705 = vadd.f32 %v703, %v704
        %v706 = vrot.slane %v705, 1
        %v707 = vadd.f32 %v705, %v706
        %v708 = vadd.f32 %v684, %v688
        %v709 = vadd.f32 %v708, %v692
        %v710 = vadd.f32 %v709, %v696
        %v711 = vrot.slane %v710, 4
        %v712 = vadd.f32 %v710, %v711
        %v713 = vrot.slane %v712, 2
        %v714 = vadd.f32 %v712, %v713
        %v715 = vrot.slane %v714, 1
        %v716 = vadd.f32 %v714, %v715
        %v717 = vadd.f32 %v685, %v689
        %v718 = vadd.f32 %v717, %v693
        %v719 = vadd.f32 %v718, %v697
        %v720 = vrot.slane %v719, 4
        %v721 = vadd.f32 %v719, %v720
        %v722 = vrot.slane %v721, 2
        %v723 = vadd.f32 %v721, %v722
        %v724 = vrot.slane %v723, 1
        %v725 = vadd.f32 %v723, %v724
        %v726 = vadd.f32 %v686, %v690
        %v727 = vadd.f32 %v726, %v694
        %v728 = vadd.f32 %v727, %v698
        %v729 = vrot.slane %v728, 4
        %v730 = vadd.f32 %v728, %v729
        %v731 = vrot.slane %v730, 2
        %v732 = vadd.f32 %v730, %v731
        %v733 = vrot.slane %v732, 1
        %v734 = vadd.f32 %v732, %v733
        %v735 = vmul.f32 %v707, %v662
        %v736 = vmul.f32 %v716, %v662
        %v737 = vmul.f32 %v725, %v662
        %v738 = vmul.f32 %v734, %v662
        %v739 = vadd.f32 %v735, 1e-05
        %v740 = vadd.f32 %v736, 1e-05
        %v741 = vadd.f32 %v737, 1e-05
        %v742 = vadd.f32 %v738, 1e-05
        %v743 = vrsqrt.pop %v739
        %v744 = vrsqrt.pop %v740
        %v745 = vrsqrt.pop %v741
        %v746 = vrsqrt.pop %v742
        %v747 = vmul.f32 %v667, %v743
        %v748 = vmul.f32 %v668, %v744
        %v749 = vmul.f32 %v669, %v745
        %v750 = vmul.f32 %v670, %v746
        %v751 = vmul.f32 %v671, %v743
        %v752 = vmul.f32 %v672, %v744
        %v753 = vmul.f32 %v673, %v745
        %v754 = vmul.f32 %v674, %v746
        %v755 = vmul.f32 %v675, %v743
        %v756 = vmul.f32 %v676, %v744
        %v757 = vmul.f32 %v677, %v745
        %v758 = vmul.f32 %v678, %v746
        %v759 = vmul.f32 %v679, %v743
        %v760 = vmul.f32 %v680, %v744
        %v761 = vmul.f32 %v681, %v745
        %v762 = vmul.f32 %v682, %v746
        %764 = vset.pattern.permute.xlu0 0
        %765 = vperm.xlu0 %764, %v618
        %v766 = vpop.permute.xlu0 %765
        %769 = vset.pattern.permute.xlu0 0
        %770 = vperm.xlu0 %769, %v619
        %v771 = vpop.permute.xlu0 %770
        %774 = vset.pattern.permute.xlu0 0
        %775 = vperm.xlu0 %774, %v620
        %v776 = vpop.permute.xlu0 %775
        %779 = vset.pattern.permute.xlu0 0
        %780 = vperm.xlu0 %779, %v621
        %v781 = vpop.permute.xlu0 %780
        %v783 = vmul.f32 %v747, %v766
        %v784 = vmul.f32 %v748, %v766
        %v785 = vmul.f32 %v749, %v766
        %v786 = vmul.f32 %v750, %v766
        %v787 = vmul.f32 %v751, %v771
        %v788 = vmul.f32 %v752, %v771
        %v789 = vmul.f32 %v753, %v771
        %v790 = vmul.f32 %v754, %v771
        %v791 = vmul.f32 %v755, %v776
        %v792 = vmul.f32 %v756, %v776
        %v793 = vmul.f32 %v757, %v776
        %v794 = vmul.f32 %v758, %v776
        %v795 = vmul.f32 %v759, %v781
        %v796 = vmul.f32 %v760, %v781
        %v797 = vmul.f32 %v761, %v781
        %v798 = vmul.f32 %v762, %v781
        %800 = vset.pattern.permute.xlu0 0
        %801 = vperm.xlu0 %800, %v622
        %v802 = vpop.permute.xlu0 %801
        %805 = vset.pattern.permute.xlu0 0
        %806 = vperm.xlu0 %805, %v623
        %v807 = vpop.permute.xlu0 %806
        %810 = vset.pattern.permute.xlu0 0
        %811 = vperm.xlu0 %810, %v624
        %v812 = vpop.permute.xlu0 %811
        %815 = vset.pattern.permute.xlu0 0
        %816 = vperm.xlu0 %815, %v625
        %v817 = vpop.permute.xlu0 %816
        %v819 = vadd.f32 %v783, %v802
        %v820 = vadd.f32 %v784, %v802
        %v821 = vadd.f32 %v785, %v802
        %v822 = vadd.f32 %v786, %v802
        %v823 = vadd.f32 %v787, %v807
        %v824 = vadd.f32 %v788, %v807
        %v825 = vadd.f32 %v789, %v807
        %v826 = vadd.f32 %v790, %v807
        %v827 = vadd.f32 %v791, %v812
        %v828 = vadd.f32 %v792, %v812
        %v829 = vadd.f32 %v793, %v812
        %v830 = vadd.f32 %v794, %v812
        %v831 = vadd.f32 %v795, %v817
        %v832 = vadd.f32 %v796, %v817
        %v833 = vadd.f32 %v797, %v817
        %v834 = vadd.f32 %v798, %v817
        %v835 = vmul.f32 %v819, 0.5
        %v836 = vmul.f32 %v820, 0.5
        %v837 = vmul.f32 %v821, 0.5
        %v838 = vmul.f32 %v822, 0.5
        %v839 = vmul.f32 %v823, 0.5
        %v840 = vmul.f32 %v824, 0.5
        %v841 = vmul.f32 %v825, 0.5
        %v842 = vmul.f32 %v826, 0.5
        %v843 = vmul.f32 %v827, 0.5
        %v844 = vmul.f32 %v828, 0.5
        %v845 = vmul.f32 %v829, 0.5
        %v846 = vmul.f32 %v830, 0.5
        %v847 = vmul.f32 %v831, 0.5
        %v848 = vmul.f32 %v832, 0.5
        %v849 = vmul.f32 %v833, 0.5
        %v850 = vmul.f32 %v834, 0.5
        %v851 = vmul.f32 %v819, 0.70710677
        %v852 = vmul.f32 %v820, 0.70710677
        %v853 = vmul.f32 %v821, 0.70710677
        %v854 = vmul.f32 %v822, 0.70710677
        %v855 = vmul.f32 %v823, 0.70710677
        %v856 = vmul.f32 %v824, 0.70710677
        %v857 = vmul.f32 %v825, 0.70710677
        %v858 = vmul.f32 %v826, 0.70710677
        %v859 = vmul.f32 %v827, 0.70710677
        %v860 = vmul.f32 %v828, 0.70710677
        %v861 = vmul.f32 %v829, 0.70710677
        %v862 = vmul.f32 %v830, 0.70710677
        %v863 = vmul.f32 %v831, 0.70710677
        %v864 = vmul.f32 %v832, 0.70710677
        %v865 = vmul.f32 %v833, 0.70710677
        %v866 = vmul.f32 %v834, 0.70710677
        %v867 = verf.f32.pop %v851
        %v868 = verf.f32.pop %v852
        %v869 = verf.f32.pop %v853
        %v870 = verf.f32.pop %v854
        %v871 = verf.f32.pop %v855
        %v872 = verf.f32.pop %v856
        %v873 = verf.f32.pop %v857
        %v874 = verf.f32.pop %v858
        %v875 = verf.f32.pop %v859
        %v876 = verf.f32.pop %v860
        %v877 = verf.f32.pop %v861
        %v878 = verf.f32.pop %v862
        %v879 = verf.f32.pop %v863
        %v880 = verf.f32.pop %v864
        %v881 = verf.f32.pop %v865
        %v882 = verf.f32.pop %v866
        %v883 = vadd.f32 %v867, 1.0
        %v884 = vadd.f32 %v868, 1.0
        %v885 = vadd.f32 %v869, 1.0
        %v886 = vadd.f32 %v870, 1.0
        %v887 = vadd.f32 %v871, 1.0
        %v888 = vadd.f32 %v872, 1.0
        %v889 = vadd.f32 %v873, 1.0
        %v890 = vadd.f32 %v874, 1.0
        %v891 = vadd.f32 %v875, 1.0
        %v892 = vadd.f32 %v876, 1.0
        %v893 = vadd.f32 %v877, 1.0
        %v894 = vadd.f32 %v878, 1.0
        %v895 = vadd.f32 %v879, 1.0
        %v896 = vadd.f32 %v880, 1.0
        %v897 = vadd.f32 %v881, 1.0
        %v898 = vadd.f32 %v882, 1.0
        %v899 = vmul.f32 %v835, %v883
        %v900 = vmul.f32 %v836, %v884
        %v901 = vmul.f32 %v837, %v885
        %v902 = vmul.f32 %v838, %v886
        %v903 = vmul.f32 %v839, %v887
        %v904 = vmul.f32 %v840, %v888
        %v905 = vmul.f32 %v841, %v889
        %v906 = vmul.f32 %v842, %v890
        %v907 = vmul.f32 %v843, %v891
        %v908 = vmul.f32 %v844, %v892
        %v909 = vmul.f32 %v845, %v893
        %v910 = vmul.f32 %v846, %v894
        %v911 = vmul.f32 %v847, %v895
        %v912 = vmul.f32 %v848, %v896
        %v913 = vmul.f32 %v849, %v897
        %v914 = vmul.f32 %v850, %v898
        %v915 = vld [vmem:[%s5] sm:$0xff]
        %v916 = vld [vmem:[%s5 + $0x8] sm:$0xff]
        %v917 = vld [vmem:[%s5 + $0x10] sm:$0xff]
        %v918 = vld [vmem:[%s5 + $0x18] sm:$0xff]
        %v919 = vld [vmem:[%s5 + $0x20] sm:$0xff]
        %v920 = vld [vmem:[%s5 + $0x28] sm:$0xff]
        %v921 = vld [vmem:[%s5 + $0x30] sm:$0xff]
        %v922 = vld [vmem:[%s5 + $0x38] sm:$0xff]
        %v923 = vld [vmem:[%s6] sm:$0xff]
        %v924 = vld [vmem:[%s6 + $0x8] sm:$0xff]
        %v925 = vld [vmem:[%s6 + $0x10] sm:$0xff]
        %v926 = vld [vmem:[%s6 + $0x18] sm:$0xff]
        %v927 = vld [vmem:[%s6 + $0x20] sm:$0xff]
        %v928 = vld [vmem:[%s6 + $0x28] sm:$0xff]
        %v929 = vld [vmem:[%s6 + $0x30] sm:$0xff]
        %v930 = vld [vmem:[%s6 + $0x38] sm:$0xff]
        %932 = vset.pattern.permute.xlu0 0
        %933 = vperm.xlu0 %932, %v923
        %v934 = vpop.permute.xlu0 %933
        %937 = vset.pattern.permute.xlu0 0
        %938 = vperm.xlu0 %937, %v924
        %v939 = vpop.permute.xlu0 %938
        %942 = vset.pattern.permute.xlu0 0
        %943 = vperm.xlu0 %942, %v925
        %v944 = vpop.permute.xlu0 %943
        %947 = vset.pattern.permute.xlu0 0
        %948 = vperm.xlu0 %947, %v926
        %v949 = vpop.permute.xlu0 %948
        %952 = vset.pattern.permute.xlu0 0
        %953 = vperm.xlu0 %952, %v927
        %v954 = vpop.permute.xlu0 %953
        %957 = vset.pattern.permute.xlu0 0
        %958 = vperm.xlu0 %957, %v928
        %v959 = vpop.permute.xlu0 %958
        %962 = vset.pattern.permute.xlu0 0
        %963 = vperm.xlu0 %962, %v929
        %v964 = vpop.permute.xlu0 %963
        %967 = vset.pattern.permute.xlu0 0
        %968 = vperm.xlu0 %967, %v930
        %v969 = vpop.permute.xlu0 %968
        %vm971 = vcmask 261120
        %v973 = vsel %vm971, %v915, 0
        %v976 = vsel %vm971, %v916, 0
        %v979 = vsel %vm971, %v917, 0
        %v982 = vsel %vm971, %v918, 0
        %v985 = vsel %vm971, %v919, 0
        %v988 = vsel %vm971, %v920, 0
        %v991 = vsel %vm971, %v921, 0
        %v994 = vsel %vm971, %v922, 0
        %996 = vmatprep.subr.mxu0 %v900
        %997 = vmatpush1.msra.mxu0 %v899
        %998 = vmatprep.subr.mxu0 %v904
        %999 = vmatpush1.msra.mxu0 %v903
        %1000 = vmatprep.subr.mxu0 %v908
        %1001 = vmatpush1.msra.mxu0 %v907
        %1002 = vmatprep.subr.mxu0 %v912
        %1003 = vmatpush1.msra.mxu0 %v911
        %1004 = vmatprep.subr.mxu0 0.0
        %1005 = vmatpush1.msra.mxu0 0.0
        %1006 = vmatprep.subr.mxu0 0.0
        %1007 = vmatpush1.msra.mxu0 0.0
        %1008 = vmatprep.subr.mxu0 0.0
        %1009 = vmatpush1.msra.mxu0 0.0
        %1010 = vmatprep.subr.mxu0 0.0
        %1011 = vmatpush1.msra.mxu0 0.0
        %1012 = vmatprep.subr.mxu0 0.0
        %1013 = vmatpush1.msra.mxu0 0.0
        %1014 = vmatprep.subr.mxu0 0.0
        %1015 = vmatpush1.msra.mxu0 0.0
        %1016 = vmatprep.subr.mxu0 0.0
        %1017 = vmatpush1.msra.mxu0 0.0
        %1018 = vmatprep.subr.mxu0 0.0
        %1019 = vmatpush1.msra.mxu0 0.0
        %1020 = vmatprep.subr.mxu0 0.0
        %1021 = vmatpush1.msra.mxu0 0.0
        %1022 = vmatprep.subr.mxu0 0.0
        %1023 = vmatpush1.msra.mxu0 0.0
        %1024 = vmatprep.subr.mxu0 0.0
        %1025 = vmatpush1.msra.mxu0 0.0
        %1026 = vmatprep.subr.mxu0 0.0
        %1027 = vmatpush1.msra.mxu0 0.0
        %1028 = vmatprep.subr.mxu0 0.0
        %1029 = vmatpush1.msra.mxu0 0.0
        %1030 = vmatprep.subr.mxu0 0.0
        %1031 = vmatpush1.msra.mxu0 0.0
        %1032 = vmatprep.subr.mxu0 0.0
        %1033 = vmatpush1.msra.mxu0 0.0
        %1034 = vmatprep.subr.mxu0 0.0
        %1035 = vmatpush1.msra.mxu0 0.0
        %1036 = vmatprep.subr.mxu0 0.0
        %1037 = vmatpush1.msra.mxu0 0.0
        %1038 = vmatprep.subr.mxu0 0.0
        %1039 = vmatpush1.msra.mxu0 0.0
        %1040 = vmatprep.subr.mxu0 0.0
        %1041 = vmatpush1.msra.mxu0 0.0
        %1042 = vmatprep.subr.mxu0 0.0
        %1043 = vmatpush1.msra.mxu0 0.0
        %1044 = vmatprep.subr.mxu0 0.0
        %1045 = vmatpush1.msra.mxu0 0.0
        %1046 = vmatprep.subr.mxu0 0.0
        %1047 = vmatpush1.msra.mxu0 0.0
        %1048 = vmatprep.subr.mxu0 0.0
        %1049 = vmatpush1.msra.mxu0 0.0
        %1050 = vmatprep.subr.mxu0 0.0
        %1051 = vmatpush1.msra.mxu0 0.0
        %1052 = vmatprep.subr.mxu0 0.0
        %1053 = vmatpush1.msra.mxu0 0.0
        %1054 = vmatprep.subr.mxu0 0.0
        %1055 = vmatpush1.msra.mxu0 0.0
        %1056 = vmatprep.subr.mxu0 0.0
        %1057 = vmatpush1.msra.mxu0 0.0
        %1058 = vmatprep.subr.mxu0 0.0
        %1059 = vmatpush1.msra.mxu0 0.0
        %1060 = vmatprep.mubr.f32.mxu0 0.0
        %1061 = vmatmul.mubr.f32.gmra.mrb[0].mxu0 %v973
        %v1062 = vpop.f32.mrb[0].mxu0
        %v1063 = vadd.f32 %v934, %v1062
        %v1064 = vpop.f32.mrb[0].mxu0
        %v1065 = vadd.f32 %v934, %v1064
        %1066 = vmatprep.mubr.f32.mxu0 0.0
        %1067 = vmatmul.mubr.f32.gmra.mrb[0].mxu0 %v976
        %v1068 = vpop.f32.mrb[0].mxu0
        %v1069 = vadd.f32 %v939, %v1068
        %v1070 = vpop.f32.mrb[0].mxu0
        %v1071 = vadd.f32 %v939, %v1070
        %1072 = vmatprep.mubr.f32.mxu0 0.0
        %1073 = vmatmul.mubr.f32.gmra.mrb[0].mxu0 %v979
        %v1074 = vpop.f32.mrb[0].mxu0
        %v1075 = vadd.f32 %v944, %v1074
        %v1076 = vpop.f32.mrb[0].mxu0
        %v1077 = vadd.f32 %v944, %v1076
        %1078 = vmatprep.mubr.f32.mxu0 0.0
        %1079 = vmatmul.mubr.f32.gmra.mrb[0].mxu0 %v982
        %v1080 = vpop.f32.mrb[0].mxu0
        %v1081 = vadd.f32 %v949, %v1080
        %v1082 = vpop.f32.mrb[0].mxu0
        %v1083 = vadd.f32 %v949, %v1082
        %1084 = vmatprep.mubr.f32.mxu0 0.0
        %1085 = vmatmul.mubr.f32.gmra.mrb[0].mxu0 %v985
        %v1086 = vpop.f32.mrb[0].mxu0
        %v1087 = vadd.f32 %v954, %v1086
        %v1088 = vpop.f32.mrb[0].mxu0
        %v1089 = vadd.f32 %v954, %v1088
        %1090 = vmatprep.mubr.f32.mxu0 0.0
        %1091 = vmatmul.mubr.f32.gmra.mrb[0].mxu0 %v988
        %v1092 = vpop.f32.mrb[0].mxu0
        %v1093 = vadd.f32 %v959, %v1092
        %v1094 = vpop.f32.mrb[0].mxu0
        %v1095 = vadd.f32 %v959, %v1094
        %1096 = vmatprep.mubr.f32.mxu0 0.0
        %1097 = vmatmul.mubr.f32.gmra.mrb[0].mxu0 %v991
        %v1098 = vpop.f32.mrb[0].mxu0
        %v1099 = vadd.f32 %v964, %v1098
        %v1100 = vpop.f32.mrb[0].mxu0
        %v1101 = vadd.f32 %v964, %v1100
        %1102 = vmatprep.mubr.f32.mxu0 0.0
        %1103 = vmatmul.mubr.f32.gmra.mrb[0].mxu0 %v994
        %v1104 = vpop.f32.mrb[0].mxu0
        %v1105 = vadd.f32 %v969, %v1104
        %v1106 = vpop.f32.mrb[0].mxu0
        %v1107 = vadd.f32 %v969, %v1106
        %1108 = vdwg.mxu0
        %1109 = vmatprep.subr.mxu0 %v902
        %1110 = vmatpush1.msra.mxu0 %v901
        %1111 = vmatprep.subr.mxu0 %v906
        %1112 = vmatpush1.msra.mxu0 %v905
        %1113 = vmatprep.subr.mxu0 %v910
        %1114 = vmatpush1.msra.mxu0 %v909
        %1115 = vmatprep.subr.mxu0 %v914
        %1116 = vmatpush1.msra.mxu0 %v913
        %1117 = vmatprep.subr.mxu0 0.0
        %1118 = vmatpush1.msra.mxu0 0.0
        %1119 = vmatprep.subr.mxu0 0.0
        %1120 = vmatpush1.msra.mxu0 0.0
        %1121 = vmatprep.subr.mxu0 0.0
        %1122 = vmatpush1.msra.mxu0 0.0
        %1123 = vmatprep.subr.mxu0 0.0
        %1124 = vmatpush1.msra.mxu0 0.0
        %1125 = vmatprep.subr.mxu0 0.0
        %1126 = vmatpush1.msra.mxu0 0.0
        %1127 = vmatprep.subr.mxu0 0.0
        %1128 = vmatpush1.msra.mxu0 0.0
        %1129 = vmatprep.subr.mxu0 0.0
        %1130 = vmatpush1.msra.mxu0 0.0
        %1131 = vmatprep.subr.mxu0 0.0
        %1132 = vmatpush1.msra.mxu0 0.0
        %1133 = vmatprep.subr.mxu0 0.0
        %1134 = vmatpush1.msra.mxu0 0.0
        %1135 = vmatprep.subr.mxu0 0.0
        %1136 = vmatpush1.msra.mxu0 0.0
        %1137 = vmatprep.subr.mxu0 0.0
        %1138 = vmatpush1.msra.mxu0 0.0
        %1139 = vmatprep.subr.mxu0 0.0
        %1140 = vmatpush1.msra.mxu0 0.0
        %1141 = vmatprep.subr.mxu0 0.0
        %1142 = vmatpush1.msra.mxu0 0.0
        %1143 = vmatprep.subr.mxu0 0.0
        %1144 = vmatpush1.msra.mxu0 0.0
        %1145 = vmatprep.subr.mxu0 0.0
        %1146 = vmatpush1.msra.mxu0 0.0
        %1147 = vmatprep.subr.mxu0 0.0
        %1148 = vmatpush1.msra.mxu0 0.0
        %1149 = vmatprep.subr.mxu0 0.0
        %1150 = vmatpush1.msra.mxu0 0.0
        %1151 = vmatprep.subr.mxu0 0.0
        %1152 = vmatpush1.msra.mxu0 0.0
        %1153 = vmatprep.subr.mxu0 0.0
        %1154 = vmatpush1.msra.mxu0 0.0
        %1155 = vmatprep.subr.mxu0 0.0
        %1156 = vmatpush1.msra.mxu0 0.0
        %1157 = vmatprep.subr.mxu0 0.0
        %1158 = vmatpush1.msra.mxu0 0.0
        %1159 = vmatprep.subr.mxu0 0.0
        %1160 = vmatpush1.msra.mxu0 0.0
        %1161 = vmatprep.subr.mxu0 0.0
        %1162 = vmatpush1.msra.mxu0 0.0
        %1163 = vmatprep.subr.mxu0 0.0
        %1164 = vmatpush1.msra.mxu0 0.0
        %1165 = vmatprep.subr.mxu0 0.0
        %1166 = vmatpush1.msra.mxu0 0.0
        %1167 = vmatprep.subr.mxu0 0.0
        %1168 = vmatpush1.msra.mxu0 0.0
        %1169 = vmatprep.subr.mxu0 0.0
        %1170 = vmatpush1.msra.mxu0 0.0
        %1171 = vmatprep.subr.mxu0 0.0
        %1172 = vmatpush1.msra.mxu0 0.0
        %1173 = vmatprep.mubr.f32.mxu0 0.0
        %1174 = vmatmul.mubr.f32.gmra.mrb[0].mxu0 %v973
        %v1175 = vpop.f32.mrb[0].mxu0
        %v1176 = vadd.f32 %v934, %v1175
        %v1177 = vpop.f32.mrb[0].mxu0
        %v1178 = vadd.f32 %v934, %v1177
        %1179 = vmatprep.mubr.f32.mxu0 0.0
        %1180 = vmatmul.mubr.f32.gmra.mrb[0].mxu0 %v976
        %v1181 = vpop.f32.mrb[0].mxu0
        %v1182 = vadd.f32 %v939, %v1181
        %v1183 = vpop.f32.mrb[0].mxu0
        %v1184 = vadd.f32 %v939, %v1183
        %1185 = vmatprep.mubr.f32.mxu0 0.0
        %1186 = vmatmul.mubr.f32.gmra.mrb[0].mxu0 %v979
        %v1187 = vpop.f32.mrb[0].mxu0
        %v1188 = vadd.f32 %v944, %v1187
        %v1189 = vpop.f32.mrb[0].mxu0
        %v1190 = vadd.f32 %v944, %v1189
        %1191 = vmatprep.mubr.f32.mxu0 0.0
        %1192 = vmatmul.mubr.f32.gmra.mrb[0].mxu0 %v982
        %v1193 = vpop.f32.mrb[0].mxu0
        %v1194 = vadd.f32 %v949, %v1193
        %v1195 = vpop.f32.mrb[0].mxu0
        %v1196 = vadd.f32 %v949, %v1195
        %1197 = vmatprep.mubr.f32.mxu0 0.0
        %1198 = vmatmul.mubr.f32.gmra.mrb[0].mxu0 %v985
        %v1199 = vpop.f32.mrb[0].mxu0
        %v1200 = vadd.f32 %v954, %v1199
        %v1201 = vpop.f32.mrb[0].mxu0
        %v1202 = vadd.f32 %v954, %v1201
        %1203 = vmatprep.mubr.f32.mxu0 0.0
        %1204 = vmatmul.mubr.f32.gmra.mrb[0].mxu0 %v988
        %v1205 = vpop.f32.mrb[0].mxu0
        %v1206 = vadd.f32 %v959, %v1205
        %v1207 = vpop.f32.mrb[0].mxu0
        %v1208 = vadd.f32 %v959, %v1207
        %1209 = vmatprep.mubr.f32.mxu0 0.0
        %1210 = vmatmul.mubr.f32.gmra.mrb[0].mxu0 %v991
        %v1211 = vpop.f32.mrb[0].mxu0
        %v1212 = vadd.f32 %v964, %v1211
        %v1213 = vpop.f32.mrb[0].mxu0
        %v1214 = vadd.f32 %v964, %v1213
        %1215 = vmatprep.mubr.f32.mxu0 0.0
        %1216 = vmatmul.mubr.f32.gmra.mrb[0].mxu0 %v994
        %v1217 = vpop.f32.mrb[0].mxu0
        %v1218 = vadd.f32 %v969, %v1217
        %v1219 = vpop.f32.mrb[0].mxu0
        %v1220 = vadd.f32 %v969, %v1219
        %1221 = vdwg.mxu0
        %v1222 = vld [vmem:[%s7] sm:$0xff]
        %v1223 = vld [vmem:[%s7 + $0x8] sm:$0xff]
        %v1224 = vld [vmem:[%s7 + $0x10] sm:$0xff]
        %v1225 = vld [vmem:[%s7 + $0x18] sm:$0xff]
        %v1226 = vld [vmem:[%s7 + $0x20] sm:$0xff]
        %v1227 = vld [vmem:[%s7 + $0x28] sm:$0xff]
        %v1228 = vld [vmem:[%s7 + $0x30] sm:$0xff]
        %v1229 = vld [vmem:[%s7 + $0x38] sm:$0xff]
        %v1230 = vld [vmem:[%s8] sm:$0xff]
        %v1231 = vld [vmem:[%s8 + $0x8] sm:$0xff]
        %v1232 = vld [vmem:[%s8 + $0x10] sm:$0xff]
        %v1233 = vld [vmem:[%s8 + $0x18] sm:$0xff]
        %v1234 = vld [vmem:[%s8 + $0x20] sm:$0xff]
        %v1235 = vld [vmem:[%s8 + $0x28] sm:$0xff]
        %v1236 = vld [vmem:[%s8 + $0x30] sm:$0xff]
        %v1237 = vld [vmem:[%s8 + $0x38] sm:$0xff]
        %v1238 = vadd.f32 %v1063, %v1069
        %v1239 = vadd.f32 %v1238, %v1075
        %v1240 = vadd.f32 %v1239, %v1081
        %v1241 = vadd.f32 %v1240, %v1087
        %v1242 = vadd.f32 %v1241, %v1093
        %v1243 = vadd.f32 %v1242, %v1099
        %v1244 = vadd.f32 %v1243, %v1105
        %v1245 = vrot.slane %v1244, 4
        %v1246 = vadd.f32 %v1244, %v1245
        %v1247 = vrot.slane %v1246, 2
        %v1248 = vadd.f32 %v1246, %v1247
        %v1249 = vrot.slane %v1248, 1
        %v1250 = vadd.f32 %v1248, %v1249
        %v1251 = vadd.f32 %v1065, %v1071
        %v1252 = vadd.f32 %v1251, %v1077
        %v1253 = vadd.f32 %v1252, %v1083
        %v1254 = vadd.f32 %v1253, %v1089
        %v1255 = vadd.f32 %v1254, %v1095
        %v1256 = vadd.f32 %v1255, %v1101
        %v1257 = vadd.f32 %v1256, %v1107
        %v1258 = vrot.slane %v1257, 4
        %v1259 = vadd.f32 %v1257, %v1258
        %v1260 = vrot.slane %v1259, 2
        %v1261 = vadd.f32 %v1259, %v1260
        %v1262 = vrot.slane %v1261, 1
        %v1263 = vadd.f32 %v1261, %v1262
        %v1264 = vadd.f32 %v1176, %v1182
        %v1265 = vadd.f32 %v1264, %v1188
        %v1266 = vadd.f32 %v1265, %v1194
        %v1267 = vadd.f32 %v1266, %v1200
        %v1268 = vadd.f32 %v1267, %v1206
        %v1269 = vadd.f32 %v1268, %v1212
        %v1270 = vadd.f32 %v1269, %v1218
        %v1271 = vrot.slane %v1270, 4
        %v1272 = vadd.f32 %v1270, %v1271
        %v1273 = vrot.slane %v1272, 2
        %v1274 = vadd.f32 %v1272, %v1273
        %v1275 = vrot.slane %v1274, 1
        %v1276 = vadd.f32 %v1274, %v1275
        %v1277 = vadd.f32 %v1178, %v1184
        %v1278 = vadd.f32 %v1277, %v1190
        %v1279 = vadd.f32 %v1278, %v1196
        %v1280 = vadd.f32 %v1279, %v1202
        %v1281 = vadd.f32 %v1280, %v1208
        %v1282 = vadd.f32 %v1281, %v1214
        %v1283 = vadd.f32 %v1282, %v1220
        %v1284 = vrot.slane %v1283, 4
        %v1285 = vadd.f32 %v1283, %v1284
        %v1286 = vrot.slane %v1285, 2
        %v1287 = vadd.f32 %v1285, %v1286
        %v1288 = vrot.slane %v1287, 1
        %v1289 = vadd.f32 %v1287, %v1288
        %v1290 = vrcp.pop 64.0
        %v1291 = vmul.f32 %v1250, %v1290
        %v1292 = vmul.f32 %v1263, %v1290
        %v1293 = vmul.f32 %v1276, %v1290
        %v1294 = vmul.f32 %v1289, %v1290
        %v1295 = vsub.f32 %v1063, %v1291
        %v1296 = vsub.f32 %v1065, %v1292
        %v1297 = vsub.f32 %v1176, %v1293
        %v1298 = vsub.f32 %v1178, %v1294
        %v1299 = vsub.f32 %v1069, %v1291
        %v1300 = vsub.f32 %v1071, %v1292
        %v1301 = vsub.f32 %v1182, %v1293
        %v1302 = vsub.f32 %v1184, %v1294
        %v1303 = vsub.f32 %v1075, %v1291
        %v1304 = vsub.f32 %v1077, %v1292
        %v1305 = vsub.f32 %v1188, %v1293
        %v1306 = vsub.f32 %v1190, %v1294
        %v1307 = vsub.f32 %v1081, %v1291
        %v1308 = vsub.f32 %v1083, %v1292
        %v1309 = vsub.f32 %v1194, %v1293
        %v1310 = vsub.f32 %v1196, %v1294
        %v1311 = vsub.f32 %v1087, %v1291
        %v1312 = vsub.f32 %v1089, %v1292
        %v1313 = vsub.f32 %v1200, %v1293
        %v1314 = vsub.f32 %v1202, %v1294
        %v1315 = vsub.f32 %v1093, %v1291
        %v1316 = vsub.f32 %v1095, %v1292
        %v1317 = vsub.f32 %v1206, %v1293
        %v1318 = vsub.f32 %v1208, %v1294
        %v1319 = vsub.f32 %v1099, %v1291
        %v1320 = vsub.f32 %v1101, %v1292
        %v1321 = vsub.f32 %v1212, %v1293
        %v1322 = vsub.f32 %v1214, %v1294
        %v1323 = vsub.f32 %v1105, %v1291
        %v1324 = vsub.f32 %v1107, %v1292
        %v1325 = vsub.f32 %v1218, %v1293
        %v1326 = vsub.f32 %v1220, %v1294
        %v1327 = vmul.f32 %v1295, %v1295
        %v1328 = vmul.f32 %v1296, %v1296
        %v1329 = vmul.f32 %v1297, %v1297
        %v1330 = vmul.f32 %v1298, %v1298
        %v1331 = vmul.f32 %v1299, %v1299
        %v1332 = vmul.f32 %v1300, %v1300
        %v1333 = vmul.f32 %v1301, %v1301
        %v1334 = vmul.f32 %v1302, %v1302
        %v1335 = vmul.f32 %v1303, %v1303
        %v1336 = vmul.f32 %v1304, %v1304
        %v1337 = vmul.f32 %v1305, %v1305
        %v1338 = vmul.f32 %v1306, %v1306
        %v1339 = vmul.f32 %v1307, %v1307
        %v1340 = vmul.f32 %v1308, %v1308
        %v1341 = vmul.f32 %v1309, %v1309
        %v1342 = vmul.f32 %v1310, %v1310
        %v1343 = vmul.f32 %v1311, %v1311
        %v1344 = vmul.f32 %v1312, %v1312
        %v1345 = vmul.f32 %v1313, %v1313
        %v1346 = vmul.f32 %v1314, %v1314
        %v1347 = vmul.f32 %v1315, %v1315
        %v1348 = vmul.f32 %v1316, %v1316
        %v1349 = vmul.f32 %v1317, %v1317
        %v1350 = vmul.f32 %v1318, %v1318
        %v1351 = vmul.f32 %v1319, %v1319
        %v1352 = vmul.f32 %v1320, %v1320
        %v1353 = vmul.f32 %v1321, %v1321
        %v1354 = vmul.f32 %v1322, %v1322
        %v1355 = vmul.f32 %v1323, %v1323
        %v1356 = vmul.f32 %v1324, %v1324
        %v1357 = vmul.f32 %v1325, %v1325
        %v1358 = vmul.f32 %v1326, %v1326
        %v1359 = vadd.f32 %v1327, %v1331
        %v1360 = vadd.f32 %v1359, %v1335
        %v1361 = vadd.f32 %v1360, %v1339
        %v1362 = vadd.f32 %v1361, %v1343
        %v1363 = vadd.f32 %v1362, %v1347
        %v1364 = vadd.f32 %v1363, %v1351
        %v1365 = vadd.f32 %v1364, %v1355
        %v1366 = vrot.slane %v1365, 4
        %v1367 = vadd.f32 %v1365, %v1366
        %v1368 = vrot.slane %v1367, 2
        %v1369 = vadd.f32 %v1367, %v1368
        %v1370 = vrot.slane %v1369, 1
        %v1371 = vadd.f32 %v1369, %v1370
        %v1372 = vadd.f32 %v1328, %v1332
        %v1373 = vadd.f32 %v1372, %v1336
        %v1374 = vadd.f32 %v1373, %v1340
        %v1375 = vadd.f32 %v1374, %v1344
        %v1376 = vadd.f32 %v1375, %v1348
        %v1377 = vadd.f32 %v1376, %v1352
        %v1378 = vadd.f32 %v1377, %v1356
        %v1379 = vrot.slane %v1378, 4
        %v1380 = vadd.f32 %v1378, %v1379
        %v1381 = vrot.slane %v1380, 2
        %v1382 = vadd.f32 %v1380, %v1381
        %v1383 = vrot.slane %v1382, 1
        %v1384 = vadd.f32 %v1382, %v1383
        %v1385 = vadd.f32 %v1329, %v1333
        %v1386 = vadd.f32 %v1385, %v1337
        %v1387 = vadd.f32 %v1386, %v1341
        %v1388 = vadd.f32 %v1387, %v1345
        %v1389 = vadd.f32 %v1388, %v1349
        %v1390 = vadd.f32 %v1389, %v1353
        %v1391 = vadd.f32 %v1390, %v1357
        %v1392 = vrot.slane %v1391, 4
        %v1393 = vadd.f32 %v1391, %v1392
        %v1394 = vrot.slane %v1393, 2
        %v1395 = vadd.f32 %v1393, %v1394
        %v1396 = vrot.slane %v1395, 1
        %v1397 = vadd.f32 %v1395, %v1396
        %v1398 = vadd.f32 %v1330, %v1334
        %v1399 = vadd.f32 %v1398, %v1338
        %v1400 = vadd.f32 %v1399, %v1342
        %v1401 = vadd.f32 %v1400, %v1346
        %v1402 = vadd.f32 %v1401, %v1350
        %v1403 = vadd.f32 %v1402, %v1354
        %v1404 = vadd.f32 %v1403, %v1358
        %v1405 = vrot.slane %v1404, 4
        %v1406 = vadd.f32 %v1404, %v1405
        %v1407 = vrot.slane %v1406, 2
        %v1408 = vadd.f32 %v1406, %v1407
        %v1409 = vrot.slane %v1408, 1
        %v1410 = vadd.f32 %v1408, %v1409
        %v1411 = vmul.f32 %v1371, %v1290
        %v1412 = vmul.f32 %v1384, %v1290
        %v1413 = vmul.f32 %v1397, %v1290
        %v1414 = vmul.f32 %v1410, %v1290
        %v1415 = vadd.f32 %v1411, 1e-05
        %v1416 = vadd.f32 %v1412, 1e-05
        %v1417 = vadd.f32 %v1413, 1e-05
        %v1418 = vadd.f32 %v1414, 1e-05
        %v1419 = vrsqrt.pop %v1415
        %v1420 = vrsqrt.pop %v1416
        %v1421 = vrsqrt.pop %v1417
        %v1422 = vrsqrt.pop %v1418
        %v1423 = vmul.f32 %v1295, %v1419
        %v1424 = vmul.f32 %v1296, %v1420
        %v1425 = vmul.f32 %v1297, %v1421
        %v1426 = vmul.f32 %v1298, %v1422
        %v1427 = vmul.f32 %v1299, %v1419
        %v1428 = vmul.f32 %v1300, %v1420
        %v1429 = vmul.f32 %v1301, %v1421
        %v1430 = vmul.f32 %v1302, %v1422
        %v1431 = vmul.f32 %v1303, %v1419
        %v1432 = vmul.f32 %v1304, %v1420
        %v1433 = vmul.f32 %v1305, %v1421
        %v1434 = vmul.f32 %v1306, %v1422
        %v1435 = vmul.f32 %v1307, %v1419
        %v1436 = vmul.f32 %v1308, %v1420
        %v1437 = vmul.f32 %v1309, %v1421
        %v1438 = vmul.f32 %v1310, %v1422
        %v1439 = vmul.f32 %v1311, %v1419
        %v1440 = vmul.f32 %v1312, %v1420
        %v1441 = vmul.f32 %v1313, %v1421
        %v1442 = vmul.f32 %v1314, %v1422
        %v1443 = vmul.f32 %v1315, %v1419
        %v1444 = vmul.f32 %v1316, %v1420
        %v1445 = vmul.f32 %v1317, %v1421
        %v1446 = vmul.f32 %v1318, %v1422
        %v1447 = vmul.f32 %v1319, %v1419
        %v1448 = vmul.f32 %v1320, %v1420
        %v1449 = vmul.f32 %v1321, %v1421
        %v1450 = vmul.f32 %v1322, %v1422
        %v1451 = vmul.f32 %v1323, %v1419
        %v1452 = vmul.f32 %v1324, %v1420
        %v1453 = vmul.f32 %v1325, %v1421
        %v1454 = vmul.f32 %v1326, %v1422
        %1456 = vset.pattern.permute.xlu0 0
        %1457 = vperm.xlu0 %1456, %v1222
        %v1458 = vpop.permute.xlu0 %1457
        %1461 = vset.pattern.permute.xlu0 0
        %1462 = vperm.xlu0 %1461, %v1223
        %v1463 = vpop.permute.xlu0 %1462
        %1466 = vset.pattern.permute.xlu0 0
        %1467 = vperm.xlu0 %1466, %v1224
        %v1468 = vpop.permute.xlu0 %1467
        %1471 = vset.pattern.permute.xlu0 0
        %1472 = vperm.xlu0 %1471, %v1225
        %v1473 = vpop.permute.xlu0 %1472
        %1476 = vset.pattern.permute.xlu0 0
        %1477 = vperm.xlu0 %1476, %v1226
        %v1478 = vpop.permute.xlu0 %1477
        %1481 = vset.pattern.permute.xlu0 0
        %1482 = vperm.xlu0 %1481, %v1227
        %v1483 = vpop.permute.xlu0 %1482
        %1486 = vset.pattern.permute.xlu0 0
        %1487 = vperm.xlu0 %1486, %v1228
        %v1488 = vpop.permute.xlu0 %1487
        %1491 = vset.pattern.permute.xlu0 0
        %1492 = vperm.xlu0 %1491, %v1229
        %v1493 = vpop.permute.xlu0 %1492
        %v1495 = vmul.f32 %v1423, %v1458
        %v1496 = vmul.f32 %v1424, %v1458
        %v1497 = vmul.f32 %v1425, %v1458
        %v1498 = vmul.f32 %v1426, %v1458
        %v1499 = vmul.f32 %v1427, %v1463
        %v1500 = vmul.f32 %v1428, %v1463
        %v1501 = vmul.f32 %v1429, %v1463
        %v1502 = vmul.f32 %v1430, %v1463
        %v1503 = vmul.f32 %v1431, %v1468
        %v1504 = vmul.f32 %v1432, %v1468
        %v1505 = vmul.f32 %v1433, %v1468
        %v1506 = vmul.f32 %v1434, %v1468
        %v1507 = vmul.f32 %v1435, %v1473
        %v1508 = vmul.f32 %v1436, %v1473
        %v1509 = vmul.f32 %v1437, %v1473
        %v1510 = vmul.f32 %v1438, %v1473
        %v1511 = vmul.f32 %v1439, %v1478
        %v1512 = vmul.f32 %v1440, %v1478
        %v1513 = vmul.f32 %v1441, %v1478
        %v1514 = vmul.f32 %v1442, %v1478
        %v1515 = vmul.f32 %v1443, %v1483
        %v1516 = vmul.f32 %v1444, %v1483
        %v1517 = vmul.f32 %v1445, %v1483
        %v1518 = vmul.f32 %v1446, %v1483
        %v1519 = vmul.f32 %v1447, %v1488
        %v1520 = vmul.f32 %v1448, %v1488
        %v1521 = vmul.f32 %v1449, %v1488
        %v1522 = vmul.f32 %v1450, %v1488
        %v1523 = vmul.f32 %v1451, %v1493
        %v1524 = vmul.f32 %v1452, %v1493
        %v1525 = vmul.f32 %v1453, %v1493
        %v1526 = vmul.f32 %v1454, %v1493
        %1528 = vset.pattern.permute.xlu0 0
        %1529 = vperm.xlu0 %1528, %v1230
        %v1530 = vpop.permute.xlu0 %1529
        %1533 = vset.pattern.permute.xlu0 0
        %1534 = vperm.xlu0 %1533, %v1231
        %v1535 = vpop.permute.xlu0 %1534
        %1538 = vset.pattern.permute.xlu0 0
        %1539 = vperm.xlu0 %1538, %v1232
        %v1540 = vpop.permute.xlu0 %1539
        %1543 = vset.pattern.permute.xlu0 0
        %1544 = vperm.xlu0 %1543, %v1233
        %v1545 = vpop.permute.xlu0 %1544
        %1548 = vset.pattern.permute.xlu0 0
        %1549 = vperm.xlu0 %1548, %v1234
        %v1550 = vpop.permute.xlu0 %1549
        %1553 = vset.pattern.permute.xlu0 0
        %1554 = vperm.xlu0 %1553, %v1235
        %v1555 = vpop.permute.xlu0 %1554
        %1558 = vset.pattern.permute.xlu0 0
        %1559 = vperm.xlu0 %1558, %v1236
        %v1560 = vpop.permute.xlu0 %1559
        %1563 = vset.pattern.permute.xlu0 0
        %1564 = vperm.xlu0 %1563, %v1237
        %v1565 = vpop.permute.xlu0 %1564
        %v1567 = vadd.f32 %v1495, %v1530
        %v1568 = vadd.f32 %v1496, %v1530
        %v1569 = vadd.f32 %v1497, %v1530
        %v1570 = vadd.f32 %v1498, %v1530
        %v1571 = vadd.f32 %v1499, %v1535
        %v1572 = vadd.f32 %v1500, %v1535
        %v1573 = vadd.f32 %v1501, %v1535
        %v1574 = vadd.f32 %v1502, %v1535
        %v1575 = vadd.f32 %v1503, %v1540
        %v1576 = vadd.f32 %v1504, %v1540
        %v1577 = vadd.f32 %v1505, %v1540
        %v1578 = vadd.f32 %v1506, %v1540
        %v1579 = vadd.f32 %v1507, %v1545
        %v1580 = vadd.f32 %v1508, %v1545
        %v1581 = vadd.f32 %v1509, %v1545
        %v1582 = vadd.f32 %v1510, %v1545
        %v1583 = vadd.f32 %v1511, %v1550
        %v1584 = vadd.f32 %v1512, %v1550
        %v1585 = vadd.f32 %v1513, %v1550
        %v1586 = vadd.f32 %v1514, %v1550
        %v1587 = vadd.f32 %v1515, %v1555
        %v1588 = vadd.f32 %v1516, %v1555
        %v1589 = vadd.f32 %v1517, %v1555
        %v1590 = vadd.f32 %v1518, %v1555
        %v1591 = vadd.f32 %v1519, %v1560
        %v1592 = vadd.f32 %v1520, %v1560
        %v1593 = vadd.f32 %v1521, %v1560
        %v1594 = vadd.f32 %v1522, %v1560
        %v1595 = vadd.f32 %v1523, %v1565
        %v1596 = vadd.f32 %v1524, %v1565
        %v1597 = vadd.f32 %v1525, %v1565
        %v1598 = vadd.f32 %v1526, %v1565
        %v1599 = vmul.f32 %v1567, 0.5
        %v1600 = vmul.f32 %v1568, 0.5
        %v1601 = vmul.f32 %v1569, 0.5
        %v1602 = vmul.f32 %v1570, 0.5
        %v1603 = vmul.f32 %v1571, 0.5
        %v1604 = vmul.f32 %v1572, 0.5
        %v1605 = vmul.f32 %v1573, 0.5
        %v1606 = vmul.f32 %v1574, 0.5
        %v1607 = vmul.f32 %v1575, 0.5
        %v1608 = vmul.f32 %v1576, 0.5
        %v1609 = vmul.f32 %v1577, 0.5
        %v1610 = vmul.f32 %v1578, 0.5
        %v1611 = vmul.f32 %v1579, 0.5
        %v1612 = vmul.f32 %v1580, 0.5
        %v1613 = vmul.f32 %v1581, 0.5
        %v1614 = vmul.f32 %v1582, 0.5
        %v1615 = vmul.f32 %v1583, 0.5
        %v1616 = vmul.f32 %v1584, 0.5
        %v1617 = vmul.f32 %v1585, 0.5
        %v1618 = vmul.f32 %v1586, 0.5
        %v1619 = vmul.f32 %v1587, 0.5
        %v1620 = vmul.f32 %v1588, 0.5
        %v1621 = vmul.f32 %v1589, 0.5
        %v1622 = vmul.f32 %v1590, 0.5
        %v1623 = vmul.f32 %v1591, 0.5
        %v1624 = vmul.f32 %v1592, 0.5
        %v1625 = vmul.f32 %v1593, 0.5
        %v1626 = vmul.f32 %v1594, 0.5
        %v1627 = vmul.f32 %v1595, 0.5
        %v1628 = vmul.f32 %v1596, 0.5
        %v1629 = vmul.f32 %v1597, 0.5
        %v1630 = vmul.f32 %v1598, 0.5
        %v1631 = vmul.f32 %v1567, 0.70710677
        %v1632 = vmul.f32 %v1568, 0.70710677
        %v1633 = vmul.f32 %v1569, 0.70710677
        %v1634 = vmul.f32 %v1570, 0.70710677
        %v1635 = vmul.f32 %v1571, 0.70710677
        %v1636 = vmul.f32 %v1572, 0.70710677
        %v1637 = vmul.f32 %v1573, 0.70710677
        %v1638 = vmul.f32 %v1574, 0.70710677
        %v1639 = vmul.f32 %v1575, 0.70710677
        %v1640 = vmul.f32 %v1576, 0.70710677
        %v1641 = vmul.f32 %v1577, 0.70710677
        %v1642 = vmul.f32 %v1578, 0.70710677
        %v1643 = vmul.f32 %v1579, 0.70710677
        %v1644 = vmul.f32 %v1580, 0.70710677
        %v1645 = vmul.f32 %v1581, 0.70710677
        %v1646 = vmul.f32 %v1582, 0.70710677
        %v1647 = vmul.f32 %v1583, 0.70710677
        %v1648 = vmul.f32 %v1584, 0.70710677
        %v1649 = vmul.f32 %v1585, 0.70710677
        %v1650 = vmul.f32 %v1586, 0.70710677
        %v1651 = vmul.f32 %v1587, 0.70710677
        %v1652 = vmul.f32 %v1588, 0.70710677
        %v1653 = vmul.f32 %v1589, 0.70710677
        %v1654 = vmul.f32 %v1590, 0.70710677
        %v1655 = vmul.f32 %v1591, 0.70710677
        %v1656 = vmul.f32 %v1592, 0.70710677
        %v1657 = vmul.f32 %v1593, 0.70710677
        %v1658 = vmul.f32 %v1594, 0.70710677
        %v1659 = vmul.f32 %v1595, 0.70710677
        %v1660 = vmul.f32 %v1596, 0.70710677
        %v1661 = vmul.f32 %v1597, 0.70710677
        %v1662 = vmul.f32 %v1598, 0.70710677
        %v1663 = verf.f32.pop %v1631
        %v1664 = verf.f32.pop %v1632
        %v1665 = verf.f32.pop %v1633
        %v1666 = verf.f32.pop %v1634
        %v1667 = verf.f32.pop %v1635
        %v1668 = verf.f32.pop %v1636
        %v1669 = verf.f32.pop %v1637
        %v1670 = verf.f32.pop %v1638
        %v1671 = verf.f32.pop %v1639
        %v1672 = verf.f32.pop %v1640
        %v1673 = verf.f32.pop %v1641
        %v1674 = verf.f32.pop %v1642
        %v1675 = verf.f32.pop %v1643
        %v1676 = verf.f32.pop %v1644
        %v1677 = verf.f32.pop %v1645
        %v1678 = verf.f32.pop %v1646
        %v1679 = verf.f32.pop %v1647
        %v1680 = verf.f32.pop %v1648
        %v1681 = verf.f32.pop %v1649
        %v1682 = verf.f32.pop %v1650
        %v1683 = verf.f32.pop %v1651
        %v1684 = verf.f32.pop %v1652
        %v1685 = verf.f32.pop %v1653
        %v1686 = verf.f32.pop %v1654
        %v1687 = verf.f32.pop %v1655
        %v1688 = verf.f32.pop %v1656
        %v1689 = verf.f32.pop %v1657
        %v1690 = verf.f32.pop %v1658
        %v1691 = verf.f32.pop %v1659
        %v1692 = verf.f32.pop %v1660
        %v1693 = verf.f32.pop %v1661
        %v1694 = verf.f32.pop %v1662
        %v1695 = vadd.f32 %v1663, 1.0
        %v1696 = vadd.f32 %v1664, 1.0
        %v1697 = vadd.f32 %v1665, 1.0
        %v1698 = vadd.f32 %v1666, 1.0
        %v1699 = vadd.f32 %v1667, 1.0
        %v1700 = vadd.f32 %v1668, 1.0
        %v1701 = vadd.f32 %v1669, 1.0
        %v1702 = vadd.f32 %v1670, 1.0
        %v1703 = vadd.f32 %v1671, 1.0
        %v1704 = vadd.f32 %v1672, 1.0
        %v1705 = vadd.f32 %v1673, 1.0
        %v1706 = vadd.f32 %v1674, 1.0
        %v1707 = vadd.f32 %v1675, 1.0
        %v1708 = vadd.f32 %v1676, 1.0
        %v1709 = vadd.f32 %v1677, 1.0
        %v1710 = vadd.f32 %v1678, 1.0
        %v1711 = vadd.f32 %v1679, 1.0
        %v1712 = vadd.f32 %v1680, 1.0
        %v1713 = vadd.f32 %v1681, 1.0
        %v1714 = vadd.f32 %v1682, 1.0
        %v1715 = vadd.f32 %v1683, 1.0
        %v1716 = vadd.f32 %v1684, 1.0
        %v1717 = vadd.f32 %v1685, 1.0
        %v1718 = vadd.f32 %v1686, 1.0
        %v1719 = vadd.f32 %v1687, 1.0
        %v1720 = vadd.f32 %v1688, 1.0
        %v1721 = vadd.f32 %v1689, 1.0
        %v1722 = vadd.f32 %v1690, 1.0
        %v1723 = vadd.f32 %v1691, 1.0
        %v1724 = vadd.f32 %v1692, 1.0
        %v1725 = vadd.f32 %v1693, 1.0
        %v1726 = vadd.f32 %v1694, 1.0
        %v1727 = vmul.f32 %v1599, %v1695
        %v1728 = vmul.f32 %v1600, %v1696
        %v1729 = vmul.f32 %v1601, %v1697
        %v1730 = vmul.f32 %v1602, %v1698
        %v1731 = vmul.f32 %v1603, %v1699
        %v1732 = vmul.f32 %v1604, %v1700
        %v1733 = vmul.f32 %v1605, %v1701
        %v1734 = vmul.f32 %v1606, %v1702
        %v1735 = vmul.f32 %v1607, %v1703
        %v1736 = vmul.f32 %v1608, %v1704
        %v1737 = vmul.f32 %v1609, %v1705
        %v1738 = vmul.f32 %v1610, %v1706
        %v1739 = vmul.f32 %v1611, %v1707
        %v1740 = vmul.f32 %v1612, %v1708
        %v1741 = vmul.f32 %v1613, %v1709
        %v1742 = vmul.f32 %v1614, %v1710
        %v1743 = vmul.f32 %v1615, %v1711
        %v1744 = vmul.f32 %v1616, %v1712
        %v1745 = vmul.f32 %v1617, %v1713
        %v1746 = vmul.f32 %v1618, %v1714
        %v1747 = vmul.f32 %v1619, %v1715
        %v1748 = vmul.f32 %v1620, %v1716
        %v1749 = vmul.f32 %v1621, %v1717
        %v1750 = vmul.f32 %v1622, %v1718
        %v1751 = vmul.f32 %v1623, %v1719
        %v1752 = vmul.f32 %v1624, %v1720
        %v1753 = vmul.f32 %v1625, %v1721
        %v1754 = vmul.f32 %v1626, %v1722
        %v1755 = vmul.f32 %v1627, %v1723
        %v1756 = vmul.f32 %v1628, %v1724
        %v1757 = vmul.f32 %v1629, %v1725
        %v1758 = vmul.f32 %v1630, %v1726
        %v1759 = vld [vmem:[%s9] sm:$0xff]
        %v1760 = vld [vmem:[%s9 + $0x8] sm:$0xff]
        %v1761 = vld [vmem:[%s9 + $0x10] sm:$0xff]
        %v1762 = vld [vmem:[%s9 + $0x18] sm:$0xff]
        %v1763 = vld [vmem:[%s9 + $0x20] sm:$0xff]
        %v1764 = vld [vmem:[%s9 + $0x28] sm:$0xff]
        %v1765 = vld [vmem:[%s9 + $0x30] sm:$0xff]
        %v1766 = vld [vmem:[%s9 + $0x38] sm:$0xff]
        %v1767 = vld [vmem:[%s9 + $0x40] sm:$0xff]
        %v1768 = vld [vmem:[%s9 + $0x48] sm:$0xff]
        %v1769 = vld [vmem:[%s9 + $0x50] sm:$0xff]
        %v1770 = vld [vmem:[%s9 + $0x58] sm:$0xff]
        %v1771 = vld [vmem:[%s9 + $0x60] sm:$0xff]
        %v1772 = vld [vmem:[%s9 + $0x68] sm:$0xff]
        %v1773 = vld [vmem:[%s9 + $0x70] sm:$0xff]
        %v1774 = vld [vmem:[%s9 + $0x78] sm:$0xff]
        %v1775 = vld [vmem:[%s10] sm:$0xff]
        %v1776 = vld [vmem:[%s10 + $0x8] sm:$0xff]
        %v1777 = vld [vmem:[%s10 + $0x10] sm:$0xff]
        %v1778 = vld [vmem:[%s10 + $0x18] sm:$0xff]
        %v1779 = vld [vmem:[%s10 + $0x20] sm:$0xff]
        %v1780 = vld [vmem:[%s10 + $0x28] sm:$0xff]
        %v1781 = vld [vmem:[%s10 + $0x30] sm:$0xff]
        %v1782 = vld [vmem:[%s10 + $0x38] sm:$0xff]
        %v1783 = vld [vmem:[%s10 + $0x40] sm:$0xff]
        %v1784 = vld [vmem:[%s10 + $0x48] sm:$0xff]
        %v1785 = vld [vmem:[%s10 + $0x50] sm:$0xff]
        %v1786 = vld [vmem:[%s10 + $0x58] sm:$0xff]
        %v1787 = vld [vmem:[%s10 + $0x60] sm:$0xff]
        %v1788 = vld [vmem:[%s10 + $0x68] sm:$0xff]
        %v1789 = vld [vmem:[%s10 + $0x70] sm:$0xff]
        %v1790 = vld [vmem:[%s10 + $0x78] sm:$0xff]
        %1792 = vset.pattern.permute.xlu0 0
        %1793 = vperm.xlu0 %1792, %v1775
        %v1794 = vpop.permute.xlu0 %1793
        %1797 = vset.pattern.permute.xlu0 0
        %1798 = vperm.xlu0 %1797, %v1776
        %v1799 = vpop.permute.xlu0 %1798
        %1802 = vset.pattern.permute.xlu0 0
        %1803 = vperm.xlu0 %1802, %v1777
        %v1804 = vpop.permute.xlu0 %1803
        %1807 = vset.pattern.permute.xlu0 0
        %1808 = vperm.xlu0 %1807, %v1778
        %v1809 = vpop.permute.xlu0 %1808
        %1812 = vset.pattern.permute.xlu0 0
        %1813 = vperm.xlu0 %1812, %v1779
        %v1814 = vpop.permute.xlu0 %1813
        %1817 = vset.pattern.permute.xlu0 0
        %1818 = vperm.xlu0 %1817, %v1780
        %v1819 = vpop.permute.xlu0 %1818
        %1822 = vset.pattern.permute.xlu0 0
        %1823 = vperm.xlu0 %1822, %v1781
        %v1824 = vpop.permute.xlu0 %1823
        %1827 = vset.pattern.permute.xlu0 0
        %1828 = vperm.xlu0 %1827, %v1782
        %v1829 = vpop.permute.xlu0 %1828
        %1832 = vset.pattern.permute.xlu0 0
        %1833 = vperm.xlu0 %1832, %v1783
        %v1834 = vpop.permute.xlu0 %1833
        %1837 = vset.pattern.permute.xlu0 0
        %1838 = vperm.xlu0 %1837, %v1784
        %v1839 = vpop.permute.xlu0 %1838
        %1842 = vset.pattern.permute.xlu0 0
        %1843 = vperm.xlu0 %1842, %v1785
        %v1844 = vpop.permute.xlu0 %1843
        %1847 = vset.pattern.permute.xlu0 0
        %1848 = vperm.xlu0 %1847, %v1786
        %v1849 = vpop.permute.xlu0 %1848
        %1852 = vset.pattern.permute.xlu0 0
        %1853 = vperm.xlu0 %1852, %v1787
        %v1854 = vpop.permute.xlu0 %1853
        %1857 = vset.pattern.permute.xlu0 0
        %1858 = vperm.xlu0 %1857, %v1788
        %v1859 = vpop.permute.xlu0 %1858
        %1862 = vset.pattern.permute.xlu0 0
        %1863 = vperm.xlu0 %1862, %v1789
        %v1864 = vpop.permute.xlu0 %1863
        %1867 = vset.pattern.permute.xlu0 0
        %1868 = vperm.xlu0 %1867, %v1790
        %v1869 = vpop.permute.xlu0 %1868
        %vm1871 = vcmask 523264
        %v1873 = vsel %vm1871, %v1759, 0
        %v1876 = vsel %vm1871, %v1760, 0
        %v1879 = vsel %vm1871, %v1761, 0
        %v1882 = vsel %vm1871, %v1762, 0
        %v1885 = vsel %vm1871, %v1763, 0
        %v1888 = vsel %vm1871, %v1764, 0
        %v1891 = vsel %vm1871, %v1765, 0
        %v1894 = vsel %vm1871, %v1766, 0
        %v1897 = vsel %vm1871, %v1767, 0
        %v1900 = vsel %vm1871, %v1768, 0
        %v1903 = vsel %vm1871, %v1769, 0
        %v1906 = vsel %vm1871, %v1770, 0
        %v1909 = vsel %vm1871, %v1771, 0
        %v1912 = vsel %vm1871, %v1772, 0
        %v1915 = vsel %vm1871, %v1773, 0
        %v1918 = vsel %vm1871, %v1774, 0
        %1920 = vmatprep.subr.mxu0 %v1728
        %1921 = vmatpush1.msra.mxu0 %v1727
        %1922 = vmatprep.subr.mxu0 %v1732
        %1923 = vmatpush1.msra.mxu0 %v1731
        %1924 = vmatprep.subr.mxu0 %v1736
        %1925 = vmatpush1.msra.mxu0 %v1735
        %1926 = vmatprep.subr.mxu0 %v1740
        %1927 = vmatpush1.msra.mxu0 %v1739
        %1928 = vmatprep.subr.mxu0 %v1744
        %1929 = vmatpush1.msra.mxu0 %v1743
        %1930 = vmatprep.subr.mxu0 %v1748
        %1931 = vmatpush1.msra.mxu0 %v1747
        %1932 = vmatprep.subr.mxu0 %v1752
        %1933 = vmatpush1.msra.mxu0 %v1751
        %1934 = vmatprep.subr.mxu0 %v1756
        %1935 = vmatpush1.msra.mxu0 %v1755
        %1936 = vmatprep.subr.mxu0 0.0
        %1937 = vmatpush1.msra.mxu0 0.0
        %1938 = vmatprep.subr.mxu0 0.0
        %1939 = vmatpush1.msra.mxu0 0.0
        %1940 = vmatprep.subr.mxu0 0.0
        %1941 = vmatpush1.msra.mxu0 0.0
        %1942 = vmatprep.subr.mxu0 0.0
        %1943 = vmatpush1.msra.mxu0 0.0
        %1944 = vmatprep.subr.mxu0 0.0
        %1945 = vmatpush1.msra.mxu0 0.0
        %1946 = vmatprep.subr.mxu0 0.0
        %1947 = vmatpush1.msra.mxu0 0.0
        %1948 = vmatprep.subr.mxu0 0.0
        %1949 = vmatpush1.msra.mxu0 0.0
        %1950 = vmatprep.subr.mxu0 0.0
        %1951 = vmatpush1.msra.mxu0 0.0
        %1952 = vmatprep.subr.mxu0 0.0
        %1953 = vmatpush1.msra.mxu0 0.0
        %1954 = vmatprep.subr.mxu0 0.0
        %1955 = vmatpush1.msra.mxu0 0.0
        %1956 = vmatprep.subr.mxu0 0.0
        %1957 = vmatpush1.msra.mxu0 0.0
        %1958 = vmatprep.subr.mxu0 0.0
        %1959 = vmatpush1.msra.mxu0 0.0
        %1960 = vmatprep.subr.mxu0 0.0
        %1961 = vmatpush1.msra.mxu0 0.0
        %1962 = vmatprep.subr.mxu0 0.0
        %1963 = vmatpush1.msra.mxu0 0.0
        %1964 = vmatprep.subr.mxu0 0.0
        %1965 = vmatpush1.msra.mxu0 0.0
        %1966 = vmatprep.subr.mxu0 0.0
        %1967 = vmatpush1.msra.mxu0 0.0
        %1968 = vmatprep.subr.mxu0 0.0
        %1969 = vmatpush1.msra.mxu0 0.0
        %1970 = vmatprep.subr.mxu0 0.0
        %1971 = vmatpush1.msra.mxu0 0.0
        %1972 = vmatprep.subr.mxu0 0.0
        %1973 = vmatpush1.msra.mxu0 0.0
        %1974 = vmatprep.subr.mxu0 0.0
        %1975 = vmatpush1.msra.mxu0 0.0
        %1976 = vmatprep.subr.mxu0 0.0
        %1977 = vmatpush1.msra.mxu0 0.0
        %1978 = vmatprep.subr.mxu0 0.0
        %1979 = vmatpush1.msra.mxu0 0.0
        %1980 = vmatprep.subr.mxu0 0.0
        %1981 = vmatpush1.msra.mxu0 0.0
        %1982 = vmatprep.subr.mxu0 0.0
        %1983 = vmatpush1.msra.mxu0 0.0
        %1984 = vmatprep.mubr.f32.mxu0 0.0
        %1985 = vmatmul.mubr.f32.gmra.mrb[0].mxu0 %v1873
        %v1986 = vpop.f32.mrb[0].mxu0
        %v1987 = vadd.f32 %v1794, %v1986
        %v1988 = vpop.f32.mrb[0].mxu0
        %v1989 = vadd.f32 %v1794, %v1988
        %1990 = vmatprep.mubr.f32.mxu0 0.0
        %1991 = vmatmul.mubr.f32.gmra.mrb[0].mxu0 %v1876
        %v1992 = vpop.f32.mrb[0].mxu0
        %v1993 = vadd.f32 %v1799, %v1992
        %v1994 = vpop.f32.mrb[0].mxu0
        %v1995 = vadd.f32 %v1799, %v1994
        %1996 = vmatprep.mubr.f32.mxu0 0.0
        %1997 = vmatmul.mubr.f32.gmra.mrb[0].mxu0 %v1879
        %v1998 = vpop.f32.mrb[0].mxu0
        %v1999 = vadd.f32 %v1804, %v1998
        %v2000 = vpop.f32.mrb[0].mxu0
        %v2001 = vadd.f32 %v1804, %v2000
        %2002 = vmatprep.mubr.f32.mxu0 0.0
        %2003 = vmatmul.mubr.f32.gmra.mrb[0].mxu0 %v1882
        %v2004 = vpop.f32.mrb[0].mxu0
        %v2005 = vadd.f32 %v1809, %v2004
        %v2006 = vpop.f32.mrb[0].mxu0
        %v2007 = vadd.f32 %v1809, %v2006
        %2008 = vmatprep.mubr.f32.mxu0 0.0
        %2009 = vmatmul.mubr.f32.gmra.mrb[0].mxu0 %v1885
        %v2010 = vpop.f32.mrb[0].mxu0
        %v2011 = vadd.f32 %v1814, %v2010
        %v2012 = vpop.f32.mrb[0].mxu0
        %v2013 = vadd.f32 %v1814, %v2012
        %2014 = vmatprep.mubr.f32.mxu0 0.0
        %2015 = vmatmul.mubr.f32.gmra.mrb[0].mxu0 %v1888
        %v2016 = vpop.f32.mrb[0].mxu0
        %v2017 = vadd.f32 %v1819, %v2016
        %v2018 = vpop.f32.mrb[0].mxu0
        %v2019 = vadd.f32 %v1819, %v2018
        %2020 = vmatprep.mubr.f32.mxu0 0.0
        %2021 = vmatmul.mubr.f32.gmra.mrb[0].mxu0 %v1891
        %v2022 = vpop.f32.mrb[0].mxu0
        %v2023 = vadd.f32 %v1824, %v2022
        %v2024 = vpop.f32.mrb[0].mxu0
        %v2025 = vadd.f32 %v1824, %v2024
        %2026 = vmatprep.mubr.f32.mxu0 0.0
        %2027 = vmatmul.mubr.f32.gmra.mrb[0].mxu0 %v1894
        %v2028 = vpop.f32.mrb[0].mxu0
        %v2029 = vadd.f32 %v1829, %v2028
        %v2030 = vpop.f32.mrb[0].mxu0
        %v2031 = vadd.f32 %v1829, %v2030
        %2032 = vmatprep.mubr.f32.mxu0 0.0
        %2033 = vmatmul.mubr.f32.gmra.mrb[0].mxu0 %v1897
        %v2034 = vpop.f32.mrb[0].mxu0
        %v2035 = vadd.f32 %v1834, %v2034
        %v2036 = vpop.f32.mrb[0].mxu0
        %v2037 = vadd.f32 %v1834, %v2036
        %2038 = vmatprep.mubr.f32.mxu0 0.0
        %2039 = vmatmul.mubr.f32.gmra.mrb[0].mxu0 %v1900
        %v2040 = vpop.f32.mrb[0].mxu0
        %v2041 = vadd.f32 %v1839, %v2040
        %v2042 = vpop.f32.mrb[0].mxu0
        %v2043 = vadd.f32 %v1839, %v2042
        %2044 = vmatprep.mubr.f32.mxu0 0.0
        %2045 = vmatmul.mubr.f32.gmra.mrb[0].mxu0 %v1903
        %v2046 = vpop.f32.mrb[0].mxu0
        %v2047 = vadd.f32 %v1844, %v2046
        %v2048 = vpop.f32.mrb[0].mxu0
        %v2049 = vadd.f32 %v1844, %v2048
        %2050 = vmatprep.mubr.f32.mxu0 0.0
        %2051 = vmatmul.mubr.f32.gmra.mrb[0].mxu0 %v1906
        %v2052 = vpop.f32.mrb[0].mxu0
        %v2053 = vadd.f32 %v1849, %v2052
        %v2054 = vpop.f32.mrb[0].mxu0
        %v2055 = vadd.f32 %v1849, %v2054
        %2056 = vmatprep.mubr.f32.mxu0 0.0
        %2057 = vmatmul.mubr.f32.gmra.mrb[0].mxu0 %v1909
        %v2058 = vpop.f32.mrb[0].mxu0
        %v2059 = vadd.f32 %v1854, %v2058
        %v2060 = vpop.f32.mrb[0].mxu0
        %v2061 = vadd.f32 %v1854, %v2060
        %2062 = vmatprep.mubr.f32.mxu0 0.0
        %2063 = vmatmul.mubr.f32.gmra.mrb[0].mxu0 %v1912
        %v2064 = vpop.f32.mrb[0].mxu0
        %v2065 = vadd.f32 %v1859, %v2064
        %v2066 = vpop.f32.mrb[0].mxu0
        %v2067 = vadd.f32 %v1859, %v2066
        %2068 = vmatprep.mubr.f32.mxu0 0.0
        %2069 = vmatmul.mubr.f32.gmra.mrb[0].mxu0 %v1915
        %v2070 = vpop.f32.mrb[0].mxu0
        %v2071 = vadd.f32 %v1864, %v2070
        %v2072 = vpop.f32.mrb[0].mxu0
        %v2073 = vadd.f32 %v1864, %v2072
        %2074 = vmatprep.mubr.f32.mxu0 0.0
        %2075 = vmatmul.mubr.f32.gmra.mrb[0].mxu0 %v1918
        %v2076 = vpop.f32.mrb[0].mxu0
        %v2077 = vadd.f32 %v1869, %v2076
        %v2078 = vpop.f32.mrb[0].mxu0
        %v2079 = vadd.f32 %v1869, %v2078
        %2080 = vdwg.mxu0
        %2081 = vmatprep.subr.mxu0 %v1730
        %2082 = vmatpush1.msra.mxu0 %v1729
        %2083 = vmatprep.subr.mxu0 %v1734
        %2084 = vmatpush1.msra.mxu0 %v1733
        %2085 = vmatprep.subr.mxu0 %v1738
        %2086 = vmatpush1.msra.mxu0 %v1737
        %2087 = vmatprep.subr.mxu0 %v1742
        %2088 = vmatpush1.msra.mxu0 %v1741
        %2089 = vmatprep.subr.mxu0 %v1746
        %2090 = vmatpush1.msra.mxu0 %v1745
        %2091 = vmatprep.subr.mxu0 %v1750
        %2092 = vmatpush1.msra.mxu0 %v1749
        %2093 = vmatprep.subr.mxu0 %v1754
        %2094 = vmatpush1.msra.mxu0 %v1753
        %2095 = vmatprep.subr.mxu0 %v1758
        %2096 = vmatpush1.msra.mxu0 %v1757
        %2097 = vmatprep.subr.mxu0 0.0
        %2098 = vmatpush1.msra.mxu0 0.0
        %2099 = vmatprep.subr.mxu0 0.0
        %2100 = vmatpush1.msra.mxu0 0.0
        %2101 = vmatprep.subr.mxu0 0.0
        %2102 = vmatpush1.msra.mxu0 0.0
        %2103 = vmatprep.subr.mxu0 0.0
        %2104 = vmatpush1.msra.mxu0 0.0
        %2105 = vmatprep.subr.mxu0 0.0
        %2106 = vmatpush1.msra.mxu0 0.0
        %2107 = vmatprep.subr.mxu0 0.0
        %2108 = vmatpush1.msra.mxu0 0.0
        %2109 = vmatprep.subr.mxu0 0.0
        %2110 = vmatpush1.msra.mxu0 0.0
        %2111 = vmatprep.subr.mxu0 0.0
        %2112 = vmatpush1.msra.mxu0 0.0
        %2113 = vmatprep.subr.mxu0 0.0
        %2114 = vmatpush1.msra.mxu0 0.0
        %2115 = vmatprep.subr.mxu0 0.0
        %2116 = vmatpush1.msra.mxu0 0.0
        %2117 = vmatprep.subr.mxu0 0.0
        %2118 = vmatpush1.msra.mxu0 0.0
        %2119 = vmatprep.subr.mxu0 0.0
        %2120 = vmatpush1.msra.mxu0 0.0
        %2121 = vmatprep.subr.mxu0 0.0
        %2122 = vmatpush1.msra.mxu0 0.0
        %2123 = vmatprep.subr.mxu0 0.0
        %2124 = vmatpush1.msra.mxu0 0.0
        %2125 = vmatprep.subr.mxu0 0.0
        %2126 = vmatpush1.msra.mxu0 0.0
        %2127 = vmatprep.subr.mxu0 0.0
        %2128 = vmatpush1.msra.mxu0 0.0
        %2129 = vmatprep.subr.mxu0 0.0
        %2130 = vmatpush1.msra.mxu0 0.0
        %2131 = vmatprep.subr.mxu0 0.0
        %2132 = vmatpush1.msra.mxu0 0.0
        %2133 = vmatprep.subr.mxu0 0.0
        %2134 = vmatpush1.msra.mxu0 0.0
        %2135 = vmatprep.subr.mxu0 0.0
        %2136 = vmatpush1.msra.mxu0 0.0
        %2137 = vmatprep.subr.mxu0 0.0
        %2138 = vmatpush1.msra.mxu0 0.0
        %2139 = vmatprep.subr.mxu0 0.0
        %2140 = vmatpush1.msra.mxu0 0.0
        %2141 = vmatprep.subr.mxu0 0.0
        %2142 = vmatpush1.msra.mxu0 0.0
        %2143 = vmatprep.subr.mxu0 0.0
        %2144 = vmatpush1.msra.mxu0 0.0
        %2145 = vmatprep.mubr.f32.mxu0 0.0
        %2146 = vmatmul.mubr.f32.gmra.mrb[0].mxu0 %v1873
        %v2147 = vpop.f32.mrb[0].mxu0
        %v2148 = vadd.f32 %v1794, %v2147
        %v2149 = vpop.f32.mrb[0].mxu0
        %v2150 = vadd.f32 %v1794, %v2149
        %2151 = vmatprep.mubr.f32.mxu0 0.0
        %2152 = vmatmul.mubr.f32.gmra.mrb[0].mxu0 %v1876
        %v2153 = vpop.f32.mrb[0].mxu0
        %v2154 = vadd.f32 %v1799, %v2153
        %v2155 = vpop.f32.mrb[0].mxu0
        %v2156 = vadd.f32 %v1799, %v2155
        %2157 = vmatprep.mubr.f32.mxu0 0.0
        %2158 = vmatmul.mubr.f32.gmra.mrb[0].mxu0 %v1879
        %v2159 = vpop.f32.mrb[0].mxu0
        %v2160 = vadd.f32 %v1804, %v2159
        %v2161 = vpop.f32.mrb[0].mxu0
        %v2162 = vadd.f32 %v1804, %v2161
        %2163 = vmatprep.mubr.f32.mxu0 0.0
        %2164 = vmatmul.mubr.f32.gmra.mrb[0].mxu0 %v1882
        %v2165 = vpop.f32.mrb[0].mxu0
        %v2166 = vadd.f32 %v1809, %v2165
        %v2167 = vpop.f32.mrb[0].mxu0
        %v2168 = vadd.f32 %v1809, %v2167
        %2169 = vmatprep.mubr.f32.mxu0 0.0
        %2170 = vmatmul.mubr.f32.gmra.mrb[0].mxu0 %v1885
        %v2171 = vpop.f32.mrb[0].mxu0
        %v2172 = vadd.f32 %v1814, %v2171
        %v2173 = vpop.f32.mrb[0].mxu0
        %v2174 = vadd.f32 %v1814, %v2173
        %2175 = vmatprep.mubr.f32.mxu0 0.0
        %2176 = vmatmul.mubr.f32.gmra.mrb[0].mxu0 %v1888
        %v2177 = vpop.f32.mrb[0].mxu0
        %v2178 = vadd.f32 %v1819, %v2177
        %v2179 = vpop.f32.mrb[0].mxu0
        %v2180 = vadd.f32 %v1819, %v2179
        %2181 = vmatprep.mubr.f32.mxu0 0.0
        %2182 = vmatmul.mubr.f32.gmra.mrb[0].mxu0 %v1891
        %v2183 = vpop.f32.mrb[0].mxu0
        %v2184 = vadd.f32 %v1824, %v2183
        %v2185 = vpop.f32.mrb[0].mxu0
        %v2186 = vadd.f32 %v1824, %v2185
        %2187 = vmatprep.mubr.f32.mxu0 0.0
        %2188 = vmatmul.mubr.f32.gmra.mrb[0].mxu0 %v1894
        %v2189 = vpop.f32.mrb[0].mxu0
        %v2190 = vadd.f32 %v1829, %v2189
        %v2191 = vpop.f32.mrb[0].mxu0
        %v2192 = vadd.f32 %v1829, %v2191
        %2193 = vmatprep.mubr.f32.mxu0 0.0
        %2194 = vmatmul.mubr.f32.gmra.mrb[0].mxu0 %v1897
        %v2195 = vpop.f32.mrb[0].mxu0
        %v2196 = vadd.f32 %v1834, %v2195
        %v2197 = vpop.f32.mrb[0].mxu0
        %v2198 = vadd.f32 %v1834, %v2197
        %2199 = vmatprep.mubr.f32.mxu0 0.0
        %2200 = vmatmul.mubr.f32.gmra.mrb[0].mxu0 %v1900
        %v2201 = vpop.f32.mrb[0].mxu0
        %v2202 = vadd.f32 %v1839, %v2201
        %v2203 = vpop.f32.mrb[0].mxu0
        %v2204 = vadd.f32 %v1839, %v2203
        %2205 = vmatprep.mubr.f32.mxu0 0.0
        %2206 = vmatmul.mubr.f32.gmra.mrb[0].mxu0 %v1903
        %v2207 = vpop.f32.mrb[0].mxu0
        %v2208 = vadd.f32 %v1844, %v2207
        %v2209 = vpop.f32.mrb[0].mxu0
        %v2210 = vadd.f32 %v1844, %v2209
        %2211 = vmatprep.mubr.f32.mxu0 0.0
        %2212 = vmatmul.mubr.f32.gmra.mrb[0].mxu0 %v1906
        %v2213 = vpop.f32.mrb[0].mxu0
        %v2214 = vadd.f32 %v1849, %v2213
        %v2215 = vpop.f32.mrb[0].mxu0
        %v2216 = vadd.f32 %v1849, %v2215
        %2217 = vmatprep.mubr.f32.mxu0 0.0
        %2218 = vmatmul.mubr.f32.gmra.mrb[0].mxu0 %v1909
        %v2219 = vpop.f32.mrb[0].mxu0
        %v2220 = vadd.f32 %v1854, %v2219
        %v2221 = vpop.f32.mrb[0].mxu0
        %v2222 = vadd.f32 %v1854, %v2221
        %2223 = vmatprep.mubr.f32.mxu0 0.0
        %2224 = vmatmul.mubr.f32.gmra.mrb[0].mxu0 %v1912
        %v2225 = vpop.f32.mrb[0].mxu0
        %v2226 = vadd.f32 %v1859, %v2225
        %v2227 = vpop.f32.mrb[0].mxu0
        %v2228 = vadd.f32 %v1859, %v2227
        %2229 = vmatprep.mubr.f32.mxu0 0.0
        %2230 = vmatmul.mubr.f32.gmra.mrb[0].mxu0 %v1915
        %v2231 = vpop.f32.mrb[0].mxu0
        %v2232 = vadd.f32 %v1864, %v2231
        %v2233 = vpop.f32.mrb[0].mxu0
        %v2234 = vadd.f32 %v1864, %v2233
        %2235 = vmatprep.mubr.f32.mxu0 0.0
        %2236 = vmatmul.mubr.f32.gmra.mrb[0].mxu0 %v1918
        %v2237 = vpop.f32.mrb[0].mxu0
        %v2238 = vadd.f32 %v1869, %v2237
        %v2239 = vpop.f32.mrb[0].mxu0
        %v2240 = vadd.f32 %v1869, %v2239
        %2241 = vdwg.mxu0
        %2242 = vst [vmem:[%s404] sm:$0xff] %v1987
        %2243 = vst [vmem:[%s404 + $0x8] sm:$0xff] %v1989
        %2244 = vst [vmem:[%s404 + $0x10] sm:$0xff] %v2148
        %2245 = vst [vmem:[%s404 + $0x18] sm:$0xff] %v2150
        %2246 = vst [vmem:[%s404 + $0x20] sm:$0xff] %v1993
        %2247 = vst [vmem:[%s404 + $0x28] sm:$0xff] %v1995
        %2248 = vst [vmem:[%s404 + $0x30] sm:$0xff] %v2154
        %2249 = vst [vmem:[%s404 + $0x38] sm:$0xff] %v2156
        %2250 = vst [vmem:[%s404 + $0x40] sm:$0xff] %v1999
        %2251 = vst [vmem:[%s404 + $0x48] sm:$0xff] %v2001
        %2252 = vst [vmem:[%s404 + $0x50] sm:$0xff] %v2160
        %2253 = vst [vmem:[%s404 + $0x58] sm:$0xff] %v2162
        %2254 = vst [vmem:[%s404 + $0x60] sm:$0xff] %v2005
        %2255 = vst [vmem:[%s404 + $0x68] sm:$0xff] %v2007
        %2256 = vst [vmem:[%s404 + $0x70] sm:$0xff] %v2166
        %2257 = vst [vmem:[%s404 + $0x78] sm:$0xff] %v2168
        %2258 = vst [vmem:[%s404 + $0x80] sm:$0xff] %v2011
        %2259 = vst [vmem:[%s404 + $0x88] sm:$0xff] %v2013
        %2260 = vst [vmem:[%s404 + $0x90] sm:$0xff] %v2172
        %2261 = vst [vmem:[%s404 + $0x98] sm:$0xff] %v2174
        %2262 = vst [vmem:[%s404 + $0xa0] sm:$0xff] %v2017
        %2263 = vst [vmem:[%s404 + $0xa8] sm:$0xff] %v2019
        %2264 = vst [vmem:[%s404 + $0xb0] sm:$0xff] %v2178
        %2265 = vst [vmem:[%s404 + $0xb8] sm:$0xff] %v2180
        %2266 = vst [vmem:[%s404 + $0xc0] sm:$0xff] %v2023
        %2267 = vst [vmem:[%s404 + $0xc8] sm:$0xff] %v2025
        %2268 = vst [vmem:[%s404 + $0xd0] sm:$0xff] %v2184
        %2269 = vst [vmem:[%s404 + $0xd8] sm:$0xff] %v2186
        %2270 = vst [vmem:[%s404 + $0xe0] sm:$0xff] %v2029
        %2271 = vst [vmem:[%s404 + $0xe8] sm:$0xff] %v2031
        %2272 = vst [vmem:[%s404 + $0xf0] sm:$0xff] %v2190
        %2273 = vst [vmem:[%s404 + $0xf8] sm:$0xff] %v2192
        %2274 = vst [vmem:[%s404 + $0x100] sm:$0xff] %v2035
        %2275 = vst [vmem:[%s404 + $0x108] sm:$0xff] %v2037
        %2276 = vst [vmem:[%s404 + $0x110] sm:$0xff] %v2196
        %2277 = vst [vmem:[%s404 + $0x118] sm:$0xff] %v2198
        %2278 = vst [vmem:[%s404 + $0x120] sm:$0xff] %v2041
        %2279 = vst [vmem:[%s404 + $0x128] sm:$0xff] %v2043
        %2280 = vst [vmem:[%s404 + $0x130] sm:$0xff] %v2202
        %2281 = vst [vmem:[%s404 + $0x138] sm:$0xff] %v2204
        %2282 = vst [vmem:[%s404 + $0x140] sm:$0xff] %v2047
        %2283 = vst [vmem:[%s404 + $0x148] sm:$0xff] %v2049
        %2284 = vst [vmem:[%s404 + $0x150] sm:$0xff] %v2208
        %2285 = vst [vmem:[%s404 + $0x158] sm:$0xff] %v2210
        %2286 = vst [vmem:[%s404 + $0x160] sm:$0xff] %v2053
        %2287 = vst [vmem:[%s404 + $0x168] sm:$0xff] %v2055
        %2288 = vst [vmem:[%s404 + $0x170] sm:$0xff] %v2214
        %2289 = vst [vmem:[%s404 + $0x178] sm:$0xff] %v2216
        %2290 = vst [vmem:[%s404 + $0x180] sm:$0xff] %v2059
        %2291 = vst [vmem:[%s404 + $0x188] sm:$0xff] %v2061
        %2292 = vst [vmem:[%s404 + $0x190] sm:$0xff] %v2220
        %2293 = vst [vmem:[%s404 + $0x198] sm:$0xff] %v2222
        %2294 = vst [vmem:[%s404 + $0x1a0] sm:$0xff] %v2065
        %2295 = vst [vmem:[%s404 + $0x1a8] sm:$0xff] %v2067
        %2296 = vst [vmem:[%s404 + $0x1b0] sm:$0xff] %v2226
        %2297 = vst [vmem:[%s404 + $0x1b8] sm:$0xff] %v2228
        %2298 = vst [vmem:[%s404 + $0x1c0] sm:$0xff] %v2071
        %2299 = vst [vmem:[%s404 + $0x1c8] sm:$0xff] %v2073
        %2300 = vst [vmem:[%s404 + $0x1d0] sm:$0xff] %v2232
        %2301 = vst [vmem:[%s404 + $0x1d8] sm:$0xff] %v2234
        %2302 = vst [vmem:[%s404 + $0x1e0] sm:$0xff] %v2077
        %2303 = vst [vmem:[%s404 + $0x1e8] sm:$0xff] %v2079
        %2304 = vst [vmem:[%s404 + $0x1f0] sm:$0xff] %v2238
        %2305 = vst [vmem:[%s404 + $0x1f8] sm:$0xff] %v2240
        %s2306 = sand.u32 %s285, 1
        %s2307 = scalar_lea.sflag [#allocation3], %s2306
        %s2308 = sand.u32 %s285, 1
        %s2309 = smul.addr %s2308, 512
        %s2310 = scalar_lea.vmem [#allocation2], %s2309
        // Predicated region
        $region65: #{tpu_custom_call.1} parent=63 // pred_check
          %p2311 = pneg %p295
        $region66: #{tpu_custom_call.1} parent=63 // pred_check_branch
          %2313 = sbr.rel (%p2311) target = $region68
        $region67: #{tpu_custom_call.1} parent=63 // pred_region
          %s2314 = smul.u32 4, %s30
          %s2316 = ssub.s32 8192, 8192
          %2317 = vsyncadd %s2307, %s2316
          %s2318 = smul.addr %s29, 64
          %s2319 = sadd.s32 %s2314, %s2318
          %s2320 = smul.addr %s2319, 128
          %s2321 = scalar_lea.hbm %s11, %s2320
          %s2322 = sshll.u32 %s2310, 4
          %s2323 = int_to_ptr.vmem [resolvable:$true] %s2322
          %2328 = dma.vmem_to_hbm [thread:$0]  %s2323, 8192, %s2321, %s2307, 512, 512, 32
        $region68: #{tpu_custom_call.1} parent=63 // pred_fallthru
          _
      $region64: #{tpu_custom_call.1} parent=5 // pred_fallthru
        _
      %p2329 = scmp.le.s32.totalorder 2, %s20
      // Predicated region
      $region69: #{tpu_custom_call.1} parent=5 // pred_check
        %p2330 = pneg %p2329
      $region70: #{tpu_custom_call.1} parent=5 // pred_check_branch
        %2332 = sbr.rel (%p2330) target = $region72
      $region71: #{tpu_custom_call.1} parent=5 // pred_region
        %s2333 = ssub.s32 %s20, 2
        // Predicated region
        $region73: #{tpu_custom_call.1} parent=71 // pred_check
          %p2334 = pneg %p301
        $region74: #{tpu_custom_call.1} parent=71 // pred_check_branch
          %2336 = sbr.rel (%p2334) target = $region76
        $region75: #{tpu_custom_call.1} parent=71 // pred_region
          %s2337 = sand.u32 %s286, 1
          %s2338 = scalar_lea.sflag [#allocation3], %s2337
          %s2339 = sand.u32 %s286, 1
          %s2340 = smul.addr %s2339, 512
          %s2341 = scalar_lea.vmem [#allocation2], %s2340
          %2342 = dma.done %s2338, 8192
        $region76: #{tpu_custom_call.1} parent=71 // pred_fallthru
          _
      $region72: #{tpu_custom_call.1} parent=5 // pred_fallthru
        _
    $region6: #{tpu_custom_call.1} parent=1 // loop_footer
      %s24 = sadd.s32 1, %s20
    $region7: #{tpu_custom_call.1} parent=1 // loop_footer_branch
      %19 = sbr.rel target = $region3
    $region8: #{tpu_custom_call.1} parent=1 // loop_exit
      _
    %2343 = vsyncpa [#allocation3], 1
    %s2344 = scalar_lea.sflag [#allocation3], 1
    %2345 = vsyncpa %s2344, 1

</llo_original>
